<compile_context>
chip_gen: v5e
topology: v5e:2x2
jax: 0.10.0
libtpu: 0.0.40
codegen_flags: <defaults>
</compile_context>

<pallas_src>
import jax
import jax.numpy as jnp
from jax import lax
from jax.experimental import pallas as pl
from jax.experimental.pallas import tpu as pltpu

INPUT_SIZE = 1
HIDDEN = 32
OUTPUT_SIZE = 1
NUM_LAYERS = 3


def _lstm_ffnn_kernel(x_ref, wih0_ref, wih_ref, whh_ref, b_ref, wf_ref, bf_ref,
                      o_ref, htop_ref):
    """Whole forward pass (3-layer LSTM recurrence + final linear) in one kernel.

    x_ref    : (seq, batch)               raw input (input_size == 1, squeezed)
    wih0_ref : (1, 4H)                    layer-0 W_ih, pre-transposed
    wih_ref  : (NUM_LAYERS-1, H, 4H)      layers 1..: W_ih, pre-transposed
    whh_ref  : (NUM_LAYERS, H, 4H)        per-layer W_hh, pre-transposed
    b_ref    : (NUM_LAYERS, 4H)           b_ih + b_hh per layer
    wf_ref   : (1, H)                     fc2 weight
    bf_ref   : (1, 1)  (SMEM)             fc2 bias
    o_ref    : (seq, batch)               fc2 output (reshaped to (seq,batch,1) in wrapper)
    htop_ref : (seq, batch, H)            VMEM scratch (top-layer hidden per step)
    """
    H = HIDDEN
    seq, batch = x_ref.shape

    # ---- hoist loop-invariant loads / broadcasts above the recurrence ----
    whh = [whh_ref[l] for l in range(NUM_LAYERS)]                    # (H, 4H) each
    wih = [None] + [wih_ref[l] for l in range(NUM_LAYERS - 1)]       # (H, 4H) each
    b_bc = [jnp.broadcast_to(b_ref[l][None, :], (batch, 4 * H))
            for l in range(NUM_LAYERS)]

    # Layer-0 input term for ALL timesteps: no recurrent dependency, so compute it
    # once as a vectorized broadcast-multiply (input_size == 1 -> outer product).
    x_all = x_ref[...]                                               # (seq, batch)
    xw0_all = (x_all[:, :, None] * wih0_ref[...][None, :, :]
               + b_ref[0][None, None, :])                            # (seq, batch, 4H)

    def cell(gates, h_self, c_self):
        # Full-vreg activations (2 EUP pushes), then slice (PyTorch order i,f,g,o).
        s = jax.nn.sigmoid(gates)
        tg = jnp.tanh(gates)
        i_g = s[:, 0:H]
        f_g = s[:, H:2 * H]
        o_g = s[:, 3 * H:4 * H]
        g_g = tg[:, 2 * H:3 * H]
        c_new = f_g * c_self + i_g * g_g
        h_new = o_g * jnp.tanh(c_new)
        return h_new, c_new

    # Register-resident recurrent state (SSA values, never touches VMEM).
    zeros = jnp.zeros((batch, H), jnp.float32)
    h = [zeros] * NUM_LAYERS
    c = [zeros] * NUM_LAYERS

    # Wavefront schedule: cell (l, t) depends on (l-1, t) and (l, t-1), i.e. only
    # on the previous wave w-1 where w = l + t.  All active cells within a wave
    # are independent, so their MXU/EUP/VPU work overlaps.
    n_waves = seq + NUM_LAYERS - 1
    for w in range(n_waves):
        h_prev = list(h)                      # start-of-wave (previous-wave) values
        for l in range(NUM_LAYERS):
            t = w - l
            if not (0 <= t < seq):
                continue                      # layer inactive at this wave (static)
            if l == 0:
                gates = (xw0_all[t]
                         + jnp.dot(h_prev[0], whh[0],
                                   preferred_element_type=jnp.float32))
            else:
                gates = (jnp.dot(h_prev[l - 1], wih[l],
                                 preferred_element_type=jnp.float32)
                         + jnp.dot(h_prev[l], whh[l],
                                   preferred_element_type=jnp.float32)
                         + b_bc[l])
            h_new, c_new = cell(gates, h_prev[l], c[l])
            h[l] = h_new
            c[l] = c_new
            if l == NUM_LAYERS - 1:
                # Stage top-layer hidden; store is off the recurrence critical path.
                htop_ref[t] = h_new

    # ---- final Linear(HIDDEN, 1): one batched lane-reduction + one dense 2-D store ----
    wf = wf_ref[0]                                                   # (H,)
    bf = bf_ref[0, 0]                                                # SMEM scalar
    o_ref[...] = jnp.sum(htop_ref[...] * wf[None, None, :], axis=-1) + bf


def _pack_params(layers, w_fc2, b_fc2):
    """PyTorch-format per-layer weights -> kernel layout (pre-transposed)."""
    wih0 = layers[0][0].T                                            # (1, 4H)
    wih12 = jnp.stack([layers[l][0].T for l in range(1, NUM_LAYERS)])  # (L-1, H, 4H)
    whh = jnp.stack([layers[l][1].T for l in range(NUM_LAYERS)])       # (L, H, 4H)
    b = jnp.stack([layers[l][2] + layers[l][3] for l in range(NUM_LAYERS)])  # (L, 4H)
    bf = b_fc2.reshape(1, 1)
    return wih0, wih12, whh, b, w_fc2, bf


def feedforward_nn_forward(x, params):
    """x: (seq, batch, INPUT_SIZE) float32 -> (seq, batch, OUTPUT_SIZE)."""
    layers, w_fc2, b_fc2 = params
    wih0, wih12, whh, b, wf, bf = _pack_params(layers, w_fc2, b_fc2)
    seq, batch, _ = x.shape
    x2 = x.reshape(seq, batch)          # INPUT_SIZE == 1: lane-denser 2-D layout

    vmem = pl.BlockSpec(memory_space=pltpu.MemorySpace.VMEM)
    smem = pl.BlockSpec(memory_space=pltpu.MemorySpace.SMEM)

    out2 = pl.pallas_call(
        _lstm_ffnn_kernel,
        out_shape=jax.ShapeDtypeStruct((seq, batch), jnp.float32),
        in_specs=[vmem] * 6 + [smem],
        out_specs=vmem,
        scratch_shapes=[
            pltpu.VMEM((seq, batch, HIDDEN), jnp.float32),   # top-layer h per step
        ],
    )(x2, wih0, wih12, whh, b, wf, bf)
    return out2.reshape(seq, batch, OUTPUT_SIZE)


def init_params(key):
    """Deterministic parameter init (PyTorch-style U(-1/sqrt(H), 1/sqrt(H))),
    kept in PyTorch-native per-layer shapes."""
    k = 1.0 / jnp.sqrt(jnp.float32(HIDDEN))
    keys = jax.random.split(key, 4 * NUM_LAYERS + 2)
    layers = []
    for layer in range(NUM_LAYERS):
        kw_ih, kw_hh, kb_ih, kb_hh = keys[4 * layer:4 * layer + 4]
        in_dim = INPUT_SIZE if layer == 0 else HIDDEN
        w_ih = jax.random.uniform(kw_ih, (4 * HIDDEN, in_dim), jnp.float32, -k, k)
        w_hh = jax.random.uniform(kw_hh, (4 * HIDDEN, HIDDEN), jnp.float32, -k, k)
        b_ih = jax.random.uniform(kb_ih, (4 * HIDDEN,), jnp.float32, -k, k)
        b_hh = jax.random.uniform(kb_hh, (4 * HIDDEN,), jnp.float32, -k, k)
        layers.append((w_ih, w_hh, b_ih, b_hh))
    w_fc2 = jax.random.uniform(keys[-2], (OUTPUT_SIZE, HIDDEN), jnp.float32, -k, k)
    b_fc2 = jax.random.uniform(keys[-1], (OUTPUT_SIZE,), jnp.float32, -k, k)
    return layers, w_fc2, b_fc2


def reference_forward(x, params):
    """Pure-JAX reference with identical (PyTorch) semantics, for correctness check."""
    layers, w_fc2, b_fc2 = params
    _, batch, _ = x.shape
    h0 = jnp.zeros((NUM_LAYERS, batch, HIDDEN), jnp.float32)
    c0 = jnp.zeros((NUM_LAYERS, batch, HIDDEN), jnp.float32)

    def step(carry, x_t):
        h, c = carry
        inp = x_t
        new_h, new_c = [], []
        for layer in range(NUM_LAYERS):
            w_ih, w_hh, b_ih, b_hh = layers[layer]
            gates = inp @ w_ih.T + h[layer] @ w_hh.T + (b_ih + b_hh)[None, :]
            i_g = jax.nn.sigmoid(gates[:, 0:HIDDEN])
            f_g = jax.nn.sigmoid(gates[:, HIDDEN:2 * HIDDEN])
            g_g = jnp.tanh(gates[:, 2 * HIDDEN:3 * HIDDEN])
            o_g = jax.nn.sigmoid(gates[:, 3 * HIDDEN:4 * HIDDEN])
            c_l = f_g * c[layer] + i_g * g_g
            h_l = o_g * jnp.tanh(c_l)
            new_h.append(h_l)
            new_c.append(c_l)
            inp = h_l
        out_t = inp @ w_fc2.T + b_fc2[None, :]
        return (jnp.stack(new_h), jnp.stack(new_c)), out_t

    (_, _), outs = lax.scan(step, (h0, c0), x)
    return outs


if __name__ == "__main__":
    seq, batch = 8, 2
    key = jax.random.PRNGKey(0)
    k_x, k_p = jax.random.split(key)
    x = jax.random.normal(k_x, (seq, batch, INPUT_SIZE), jnp.float32)
    params = init_params(k_p)

    out = jax.block_until_ready(feedforward_nn_forward(x, params))
    ref = jax.block_until_ready(reference_forward(x, params))

    assert out.shape == (seq, batch, OUTPUT_SIZE)
    if not jnp.allclose(out, ref, atol=1e-5, rtol=1e-5):
        raise AssertionError("Pallas LSTM kernel does not match JAX reference")

    print("KERNEL_OK")
</pallas_src>

<mosaic_0001>
module attributes {stable_mosaic.version = 11 : i64} {
  func.func @_lstm_ffnn_kernel(%arg0: memref<8x2xf32, #tpu.memory_space<vmem>>, %arg1: memref<1x128xf32, #tpu.memory_space<vmem>>, %arg2: memref<2x32x128xf32, #tpu.memory_space<vmem>>, %arg3: memref<3x32x128xf32, #tpu.memory_space<vmem>>, %arg4: memref<3x128xf32, #tpu.memory_space<vmem>>, %arg5: memref<1x32xf32, #tpu.memory_space<vmem>>, %arg6: memref<1x1xf32, #tpu.memory_space<smem>>, %arg7: memref<8x2xf32, #tpu.memory_space<vmem>>, %arg8: memref<8x2x32xf32, #tpu.memory_space<vmem>>) attributes {dimension_semantics = [], scalar_prefetch = 0 : i64, scratch_operands = 1 : i64, tpu.core_type = #tpu.core_type<tc>} {
    %c0 = arith.constant 0 : index
    %c0_0 = arith.constant 0 : index
    %c0_1 = arith.constant 0 : index
    %0 = vector.load %arg3[%c0, %c0_0, %c0_1] : memref<3x32x128xf32, #tpu.memory_space<vmem>>, vector<1x32x128xf32>
    %1 = vector.shape_cast %0 : vector<1x32x128xf32> to vector<32x128xf32>
    %c1 = arith.constant 1 : index
    %c0_2 = arith.constant 0 : index
    %c0_3 = arith.constant 0 : index
    %2 = vector.load %arg3[%c1, %c0_2, %c0_3] : memref<3x32x128xf32, #tpu.memory_space<vmem>>, vector<1x32x128xf32>
    %3 = vector.shape_cast %2 : vector<1x32x128xf32> to vector<32x128xf32>
    %c2 = arith.constant 2 : index
    %c0_4 = arith.constant 0 : index
    %c0_5 = arith.constant 0 : index
    %4 = vector.load %arg3[%c2, %c0_4, %c0_5] : memref<3x32x128xf32, #tpu.memory_space<vmem>>, vector<1x32x128xf32>
    %5 = vector.shape_cast %4 : vector<1x32x128xf32> to vector<32x128xf32>
    %c0_6 = arith.constant 0 : index
    %c0_7 = arith.constant 0 : index
    %c0_8 = arith.constant 0 : index
    %6 = vector.load %arg2[%c0_6, %c0_7, %c0_8] : memref<2x32x128xf32, #tpu.memory_space<vmem>>, vector<1x32x128xf32>
    %7 = vector.shape_cast %6 : vector<1x32x128xf32> to vector<32x128xf32>
    %c1_9 = arith.constant 1 : index
    %c0_10 = arith.constant 0 : index
    %c0_11 = arith.constant 0 : index
    %8 = vector.load %arg2[%c1_9, %c0_10, %c0_11] : memref<2x32x128xf32, #tpu.memory_space<vmem>>, vector<1x32x128xf32>
    %9 = vector.shape_cast %8 : vector<1x32x128xf32> to vector<32x128xf32>
    %c1_12 = arith.constant 1 : index
    %c0_13 = arith.constant 0 : index
    %10 = vector.load %arg4[%c1_12, %c0_13] : memref<3x128xf32, #tpu.memory_space<vmem>>, vector<1x128xf32>
    %11 = vector.shape_cast %10 : vector<1x128xf32> to vector<128xf32>
    %12 = vector.shape_cast %11 : vector<128xf32> to vector<1x128xf32>
    %13 = vector.shape_cast %12 : vector<1x128xf32> to vector<1x128xf32>
    %14 = vector.broadcast %13 : vector<1x128xf32> to vector<2x128xf32>
    %c2_14 = arith.constant 2 : index
    %c0_15 = arith.constant 0 : index
    %15 = vector.load %arg4[%c2_14, %c0_15] : memref<3x128xf32, #tpu.memory_space<vmem>>, vector<1x128xf32>
    %16 = vector.shape_cast %15 : vector<1x128xf32> to vector<128xf32>
    %17 = vector.shape_cast %16 : vector<128xf32> to vector<1x128xf32>
    %18 = vector.shape_cast %17 : vector<1x128xf32> to vector<1x128xf32>
    %19 = vector.broadcast %18 : vector<1x128xf32> to vector<2x128xf32>
    %c0_16 = arith.constant 0 : index
    %c0_17 = arith.constant 0 : index
    %20 = vector.load %arg0[%c0_16, %c0_17] : memref<8x2xf32, #tpu.memory_space<vmem>>, vector<8x2xf32>
    %21 = vector.shape_cast %20 : vector<8x2xf32> to vector<8x2x1xf32>
    %c0_18 = arith.constant 0 : index
    %c0_19 = arith.constant 0 : index
    %22 = vector.load %arg1[%c0_18, %c0_19] : memref<1x128xf32, #tpu.memory_space<vmem>>, vector<1x128xf32>
    %23 = vector.shape_cast %22 : vector<1x128xf32> to vector<1x1x128xf32>
    %24 = vector.broadcast %21 : vector<8x2x1xf32> to vector<8x2x128xf32>
    %25 = vector.broadcast %23 : vector<1x1x128xf32> to vector<8x2x128xf32>
    %26 = arith.mulf %24, %25 : vector<8x2x128xf32>
    %c0_20 = arith.constant 0 : index
    %c0_21 = arith.constant 0 : index
    %27 = vector.load %arg4[%c0_20, %c0_21] : memref<3x128xf32, #tpu.memory_space<vmem>>, vector<1x128xf32>
    %28 = vector.shape_cast %27 : vector<1x128xf32> to vector<128xf32>
    %29 = vector.shape_cast %28 : vector<128xf32> to vector<1x1x128xf32>
    %30 = vector.broadcast %29 : vector<1x1x128xf32> to vector<8x2x128xf32>
    %31 = arith.addf %26, %30 : vector<8x2x128xf32>
    %cst = arith.constant 0.000000e+00 : f32
    %32 = vector.broadcast %cst : f32 to vector<2x32xf32>
    %33 = vector.extract_strided_slice %31 {offsets = [0, 0, 0], sizes = [1, 2, 128], strides = [1, 1, 1]} : vector<8x2x128xf32> to vector<1x2x128xf32>
    %34 = vector.shape_cast %33 : vector<1x2x128xf32> to vector<2x128xf32>
    %cst_22 = arith.constant dense<0.000000e+00> : vector<2x128xf32>
    %35 = tpu.matmul %32, %1, %cst_22 {dimension_numbers = #tpu.dot_dimension_numbers<[1], [0], [0], [1], [0, 0, 1, 1], [], []>} : vector<2x32xf32>, vector<32x128xf32>, vector<2x128xf32> -> vector<2x128xf32>
    %36 = arith.addf %34, %35 : vector<2x128xf32>
    %37 = arith.negf %36 : vector<2x128xf32>
    %38 = math.exp %37 : vector<2x128xf32>
    %cst_23 = arith.constant 1.000000e+00 : f32
    %39 = vector.broadcast %cst_23 : f32 to vector<2x128xf32>
    %40 = arith.addf %39, %38 : vector<2x128xf32>
    %41 = arith.divf %39, %40 : vector<2x128xf32>
    %42 = math.tanh %36 : vector<2x128xf32>
    %43 = vector.extract_strided_slice %41 {offsets = [0, 0], sizes = [2, 32], strides = [1, 1]} : vector<2x128xf32> to vector<2x32xf32>
    %44 = vector.extract_strided_slice %41 {offsets = [0, 32], sizes = [2, 32], strides = [1, 1]} : vector<2x128xf32> to vector<2x32xf32>
    %45 = vector.extract_strided_slice %41 {offsets = [0, 96], sizes = [2, 32], strides = [1, 1]} : vector<2x128xf32> to vector<2x32xf32>
    %46 = vector.extract_strided_slice %42 {offsets = [0, 64], sizes = [2, 32], strides = [1, 1]} : vector<2x128xf32> to vector<2x32xf32>
    %47 = arith.mulf %44, %32 : vector<2x32xf32>
    %48 = arith.mulf %43, %46 : vector<2x32xf32>
    %49 = arith.addf %47, %48 : vector<2x32xf32>
    %50 = math.tanh %49 : vector<2x32xf32>
    %51 = arith.mulf %45, %50 : vector<2x32xf32>
    %52 = vector.extract_strided_slice %31 {offsets = [1, 0, 0], sizes = [1, 2, 128], strides = [1, 1, 1]} : vector<8x2x128xf32> to vector<1x2x128xf32>
    %53 = vector.shape_cast %52 : vector<1x2x128xf32> to vector<2x128xf32>
    %cst_24 = arith.constant dense<0.000000e+00> : vector<2x128xf32>
    %54 = tpu.matmul %51, %1, %cst_24 {dimension_numbers = #tpu.dot_dimension_numbers<[1], [0], [0], [1], [0, 0, 1, 1], [], []>} : vector<2x32xf32>, vector<32x128xf32>, vector<2x128xf32> -> vector<2x128xf32>
    %55 = arith.addf %53, %54 : vector<2x128xf32>
    %56 = arith.negf %55 : vector<2x128xf32>
    %57 = math.exp %56 : vector<2x128xf32>
    %cst_25 = arith.constant 1.000000e+00 : f32
    %58 = vector.broadcast %cst_25 : f32 to vector<2x128xf32>
    %59 = arith.addf %58, %57 : vector<2x128xf32>
    %60 = arith.divf %58, %59 : vector<2x128xf32>
    %61 = math.tanh %55 : vector<2x128xf32>
    %62 = vector.extract_strided_slice %60 {offsets = [0, 0], sizes = [2, 32], strides = [1, 1]} : vector<2x128xf32> to vector<2x32xf32>
    %63 = vector.extract_strided_slice %60 {offsets = [0, 32], sizes = [2, 32], strides = [1, 1]} : vector<2x128xf32> to vector<2x32xf32>
    %64 = vector.extract_strided_slice %60 {offsets = [0, 96], sizes = [2, 32], strides = [1, 1]} : vector<2x128xf32> to vector<2x32xf32>
    %65 = vector.extract_strided_slice %61 {offsets = [0, 64], sizes = [2, 32], strides = [1, 1]} : vector<2x128xf32> to vector<2x32xf32>
    %66 = arith.mulf %63, %49 : vector<2x32xf32>
    %67 = arith.mulf %62, %65 : vector<2x32xf32>
    %68 = arith.addf %66, %67 : vector<2x32xf32>
    %69 = math.tanh %68 : vector<2x32xf32>
    %70 = arith.mulf %64, %69 : vector<2x32xf32>
    %cst_26 = arith.constant dense<0.000000e+00> : vector<2x128xf32>
    %71 = tpu.matmul %51, %7, %cst_26 {dimension_numbers = #tpu.dot_dimension_numbers<[1], [0], [0], [1], [0, 0, 1, 1], [], []>} : vector<2x32xf32>, vector<32x128xf32>, vector<2x128xf32> -> vector<2x128xf32>
    %cst_27 = arith.constant dense<0.000000e+00> : vector<2x128xf32>
    %72 = tpu.matmul %32, %3, %cst_27 {dimension_numbers = #tpu.dot_dimension_numbers<[1], [0], [0], [1], [0, 0, 1, 1], [], []>} : vector<2x32xf32>, vector<32x128xf32>, vector<2x128xf32> -> vector<2x128xf32>
    %73 = arith.addf %71, %72 : vector<2x128xf32>
    %74 = arith.addf %73, %14 : vector<2x128xf32>
    %75 = arith.negf %74 : vector<2x128xf32>
    %76 = math.exp %75 : vector<2x128xf32>
    %cst_28 = arith.constant 1.000000e+00 : f32
    %77 = vector.broadcast %cst_28 : f32 to vector<2x128xf32>
    %78 = arith.addf %77, %76 : vector<2x128xf32>
    %79 = arith.divf %77, %78 : vector<2x128xf32>
    %80 = math.tanh %74 : vector<2x128xf32>
    %81 = vector.extract_strided_slice %79 {offsets = [0, 0], sizes = [2, 32], strides = [1, 1]} : vector<2x128xf32> to vector<2x32xf32>
    %82 = vector.extract_strided_slice %79 {offsets = [0, 32], sizes = [2, 32], strides = [1, 1]} : vector<2x128xf32> to vector<2x32xf32>
    %83 = vector.extract_strided_slice %79 {offsets = [0, 96], sizes = [2, 32], strides = [1, 1]} : vector<2x128xf32> to vector<2x32xf32>
    %84 = vector.extract_strided_slice %80 {offsets = [0, 64], sizes = [2, 32], strides = [1, 1]} : vector<2x128xf32> to vector<2x32xf32>
    %85 = arith.mulf %82, %32 : vector<2x32xf32>
    %86 = arith.mulf %81, %84 : vector<2x32xf32>
    %87 = arith.addf %85, %86 : vector<2x32xf32>
    %88 = math.tanh %87 : vector<2x32xf32>
    %89 = arith.mulf %83, %88 : vector<2x32xf32>
    %90 = vector.extract_strided_slice %31 {offsets = [2, 0, 0], sizes = [1, 2, 128], strides = [1, 1, 1]} : vector<8x2x128xf32> to vector<1x2x128xf32>
    %91 = vector.shape_cast %90 : vector<1x2x128xf32> to vector<2x128xf32>
    %cst_29 = arith.constant dense<0.000000e+00> : vector<2x128xf32>
    %92 = tpu.matmul %70, %1, %cst_29 {dimension_numbers = #tpu.dot_dimension_numbers<[1], [0], [0], [1], [0, 0, 1, 1], [], []>} : vector<2x32xf32>, vector<32x128xf32>, vector<2x128xf32> -> vector<2x128xf32>
    %93 = arith.addf %91, %92 : vector<2x128xf32>
    %94 = arith.negf %93 : vector<2x128xf32>
    %95 = math.exp %94 : vector<2x128xf32>
    %cst_30 = arith.constant 1.000000e+00 : f32
    %96 = vector.broadcast %cst_30 : f32 to vector<2x128xf32>
    %97 = arith.addf %96, %95 : vector<2x128xf32>
    %98 = arith.divf %96, %97 : vector<2x128xf32>
    %99 = math.tanh %93 : vector<2x128xf32>
    %100 = vector.extract_strided_slice %98 {offsets = [0, 0], sizes = [2, 32], strides = [1, 1]} : vector<2x128xf32> to vector<2x32xf32>
    %101 = vector.extract_strided_slice %98 {offsets = [0, 32], sizes = [2, 32], strides = [1, 1]} : vector<2x128xf32> to vector<2x32xf32>
    %102 = vector.extract_strided_slice %98 {offsets = [0, 96], sizes = [2, 32], strides = [1, 1]} : vector<2x128xf32> to vector<2x32xf32>
    %103 = vector.extract_strided_slice %99 {offsets = [0, 64], sizes = [2, 32], strides = [1, 1]} : vector<2x128xf32> to vector<2x32xf32>
    %104 = arith.mulf %101, %68 : vector<2x32xf32>
    %105 = arith.mulf %100, %103 : vector<2x32xf32>
    %106 = arith.addf %104, %105 : vector<2x32xf32>
    %107 = math.tanh %106 : vector<2x32xf32>
    %108 = arith.mulf %102, %107 : vector<2x32xf32>
    %cst_31 = arith.constant dense<0.000000e+00> : vector<2x128xf32>
    %109 = tpu.matmul %70, %7, %cst_31 {dimension_numbers = #tpu.dot_dimension_numbers<[1], [0], [0], [1], [0, 0, 1, 1], [], []>} : vector<2x32xf32>, vector<32x128xf32>, vector<2x128xf32> -> vector<2x128xf32>
    %cst_32 = arith.constant dense<0.000000e+00> : vector<2x128xf32>
    %110 = tpu.matmul %89, %3, %cst_32 {dimension_numbers = #tpu.dot_dimension_numbers<[1], [0], [0], [1], [0, 0, 1, 1], [], []>} : vector<2x32xf32>, vector<32x128xf32>, vector<2x128xf32> -> vector<2x128xf32>
    %111 = arith.addf %109, %110 : vector<2x128xf32>
    %112 = arith.addf %111, %14 : vector<2x128xf32>
    %113 = arith.negf %112 : vector<2x128xf32>
    %114 = math.exp %113 : vector<2x128xf32>
    %cst_33 = arith.constant 1.000000e+00 : f32
    %115 = vector.broadcast %cst_33 : f32 to vector<2x128xf32>
    %116 = arith.addf %115, %114 : vector<2x128xf32>
    %117 = arith.divf %115, %116 : vector<2x128xf32>
    %118 = math.tanh %112 : vector<2x128xf32>
    %119 = vector.extract_strided_slice %117 {offsets = [0, 0], sizes = [2, 32], strides = [1, 1]} : vector<2x128xf32> to vector<2x32xf32>
    %120 = vector.extract_strided_slice %117 {offsets = [0, 32], sizes = [2, 32], strides = [1, 1]} : vector<2x128xf32> to vector<2x32xf32>
    %121 = vector.extract_strided_slice %117 {offsets = [0, 96], sizes = [2, 32], strides = [1, 1]} : vector<2x128xf32> to vector<2x32xf32>
    %122 = vector.extract_strided_slice %118 {offsets = [0, 64], sizes = [2, 32], strides = [1, 1]} : vector<2x128xf32> to vector<2x32xf32>
    %123 = arith.mulf %120, %87 : vector<2x32xf32>
    %124 = arith.mulf %119, %122 : vector<2x32xf32>
    %125 = arith.addf %123, %124 : vector<2x32xf32>
    %126 = math.tanh %125 : vector<2x32xf32>
    %127 = arith.mulf %121, %126 : vector<2x32xf32>
    %cst_34 = arith.constant dense<0.000000e+00> : vector<2x128xf32>
    %128 = tpu.matmul %89, %9, %cst_34 {dimension_numbers = #tpu.dot_dimension_numbers<[1], [0], [0], [1], [0, 0, 1, 1], [], []>} : vector<2x32xf32>, vector<32x128xf32>, vector<2x128xf32> -> vector<2x128xf32>
    %cst_35 = arith.constant dense<0.000000e+00> : vector<2x128xf32>
    %129 = tpu.matmul %32, %5, %cst_35 {dimension_numbers = #tpu.dot_dimension_numbers<[1], [0], [0], [1], [0, 0, 1, 1], [], []>} : vector<2x32xf32>, vector<32x128xf32>, vector<2x128xf32> -> vector<2x128xf32>
    %130 = arith.addf %128, %129 : vector<2x128xf32>
    %131 = arith.addf %130, %19 : vector<2x128xf32>
    %132 = arith.negf %131 : vector<2x128xf32>
    %133 = math.exp %132 : vector<2x128xf32>
    %cst_36 = arith.constant 1.000000e+00 : f32
    %134 = vector.broadcast %cst_36 : f32 to vector<2x128xf32>
    %135 = arith.addf %134, %133 : vector<2x128xf32>
    %136 = arith.divf %134, %135 : vector<2x128xf32>
    %137 = math.tanh %131 : vector<2x128xf32>
    %138 = vector.extract_strided_slice %136 {offsets = [0, 0], sizes = [2, 32], strides = [1, 1]} : vector<2x128xf32> to vector<2x32xf32>
    %139 = vector.extract_strided_slice %136 {offsets = [0, 32], sizes = [2, 32], strides = [1, 1]} : vector<2x128xf32> to vector<2x32xf32>
    %140 = vector.extract_strided_slice %136 {offsets = [0, 96], sizes = [2, 32], strides = [1, 1]} : vector<2x128xf32> to vector<2x32xf32>
    %141 = vector.extract_strided_slice %137 {offsets = [0, 64], sizes = [2, 32], strides = [1, 1]} : vector<2x128xf32> to vector<2x32xf32>
    %142 = arith.mulf %139, %32 : vector<2x32xf32>
    %143 = arith.mulf %138, %141 : vector<2x32xf32>
    %144 = arith.addf %142, %143 : vector<2x32xf32>
    %145 = math.tanh %144 : vector<2x32xf32>
    %146 = arith.mulf %140, %145 : vector<2x32xf32>
    %c0_37 = arith.constant 0 : index
    %c0_38 = arith.constant 0 : index
    %c0_39 = arith.constant 0 : index
    %147 = vector.load %arg8[%c0_37, %c0_38, %c0_39] : memref<8x2x32xf32, #tpu.memory_space<vmem>>, vector<1x2x32xf32>
    %148 = vector.shape_cast %147 : vector<1x2x32xf32> to vector<2x32xf32>
    %149 = vector.shape_cast %146 : vector<2x32xf32> to vector<1x2x32xf32>
    tpu.vector_store %arg8[%c0_37, %c0_38, %c0_39], %149 {strides = array<i32>} : memref<8x2x32xf32, #tpu.memory_space<vmem>>, vector<1x2x32xf32>,
    %150 = vector.extract_strided_slice %31 {offsets = [3, 0, 0], sizes = [1, 2, 128], strides = [1, 1, 1]} : vector<8x2x128xf32> to vector<1x2x128xf32>
    %151 = vector.shape_cast %150 : vector<1x2x128xf32> to vector<2x128xf32>
    %cst_40 = arith.constant dense<0.000000e+00> : vector<2x128xf32>
    %152 = tpu.matmul %108, %1, %cst_40 {dimension_numbers = #tpu.dot_dimension_numbers<[1], [0], [0], [1], [0, 0, 1, 1], [], []>} : vector<2x32xf32>, vector<32x128xf32>, vector<2x128xf32> -> vector<2x128xf32>
    %153 = arith.addf %151, %152 : vector<2x128xf32>
    %154 = arith.negf %153 : vector<2x128xf32>
    %155 = math.exp %154 : vector<2x128xf32>
    %cst_41 = arith.constant 1.000000e+00 : f32
    %156 = vector.broadcast %cst_41 : f32 to vector<2x128xf32>
    %157 = arith.addf %156, %155 : vector<2x128xf32>
    %158 = arith.divf %156, %157 : vector<2x128xf32>
    %159 = math.tanh %153 : vector<2x128xf32>
    %160 = vector.extract_strided_slice %158 {offsets = [0, 0], sizes = [2, 32], strides = [1, 1]} : vector<2x128xf32> to vector<2x32xf32>
    %161 = vector.extract_strided_slice %158 {offsets = [0, 32], sizes = [2, 32], strides = [1, 1]} : vector<2x128xf32> to vector<2x32xf32>
    %162 = vector.extract_strided_slice %158 {offsets = [0, 96], sizes = [2, 32], strides = [1, 1]} : vector<2x128xf32> to vector<2x32xf32>
    %163 = vector.extract_strided_slice %159 {offsets = [0, 64], sizes = [2, 32], strides = [1, 1]} : vector<2x128xf32> to vector<2x32xf32>
    %164 = arith.mulf %161, %106 : vector<2x32xf32>
    %165 = arith.mulf %160, %163 : vector<2x32xf32>
    %166 = arith.addf %164, %165 : vector<2x32xf32>
    %167 = math.tanh %166 : vector<2x32xf32>
    %168 = arith.mulf %162, %167 : vector<2x32xf32>
    %cst_42 = arith.constant dense<0.000000e+00> : vector<2x128xf32>
    %169 = tpu.matmul %108, %7, %cst_42 {dimension_numbers = #tpu.dot_dimension_numbers<[1], [0], [0], [1], [0, 0, 1, 1], [], []>} : vector<2x32xf32>, vector<32x128xf32>, vector<2x128xf32> -> vector<2x128xf32>
    %cst_43 = arith.constant dense<0.000000e+00> : vector<2x128xf32>
    %170 = tpu.matmul %127, %3, %cst_43 {dimension_numbers = #tpu.dot_dimension_numbers<[1], [0], [0], [1], [0, 0, 1, 1], [], []>} : vector<2x32xf32>, vector<32x128xf32>, vector<2x128xf32> -> vector<2x128xf32>
    %171 = arith.addf %169, %170 : vector<2x128xf32>
    %172 = arith.addf %171, %14 : vector<2x128xf32>
    %173 = arith.negf %172 : vector<2x128xf32>
    %174 = math.exp %173 : vector<2x128xf32>
    %cst_44 = arith.constant 1.000000e+00 : f32
    %175 = vector.broadcast %cst_44 : f32 to vector<2x128xf32>
    %176 = arith.addf %175, %174 : vector<2x128xf32>
    %177 = arith.divf %175, %176 : vector<2x128xf32>
    %178 = math.tanh %172 : vector<2x128xf32>
    %179 = vector.extract_strided_slice %177 {offsets = [0, 0], sizes = [2, 32], strides = [1, 1]} : vector<2x128xf32> to vector<2x32xf32>
    %180 = vector.extract_strided_slice %177 {offsets = [0, 32], sizes = [2, 32], strides = [1, 1]} : vector<2x128xf32> to vector<2x32xf32>
    %181 = vector.extract_strided_slice %177 {offsets = [0, 96], sizes = [2, 32], strides = [1, 1]} : vector<2x128xf32> to vector<2x32xf32>
    %182 = vector.extract_strided_slice %178 {offsets = [0, 64], sizes = [2, 32], strides = [1, 1]} : vector<2x128xf32> to vector<2x32xf32>
    %183 = arith.mulf %180, %125 : vector<2x32xf32>
    %184 = arith.mulf %179, %182 : vector<2x32xf32>
    %185 = arith.addf %183, %184 : vector<2x32xf32>
    %186 = math.tanh %185 : vector<2x32xf32>
    %187 = arith.mulf %181, %186 : vector<2x32xf32>
    %cst_45 = arith.constant dense<0.000000e+00> : vector<2x128xf32>
    %188 = tpu.matmul %127, %9, %cst_45 {dimension_numbers = #tpu.dot_dimension_numbers<[1], [0], [0], [1], [0, 0, 1, 1], [], []>} : vector<2x32xf32>, vector<32x128xf32>, vector<2x128xf32> -> vector<2x128xf32>
    %cst_46 = arith.constant dense<0.000000e+00> : vector<2x128xf32>
    %189 = tpu.matmul %146, %5, %cst_46 {dimension_numbers = #tpu.dot_dimension_numbers<[1], [0], [0], [1], [0, 0, 1, 1], [], []>} : vector<2x32xf32>, vector<32x128xf32>, vector<2x128xf32> -> vector<2x128xf32>
    %190 = arith.addf %188, %189 : vector<2x128xf32>
    %191 = arith.addf %190, %19 : vector<2x128xf32>
    %192 = arith.negf %191 : vector<2x128xf32>
    %193 = math.exp %192 : vector<2x128xf32>
    %cst_47 = arith.constant 1.000000e+00 : f32
    %194 = vector.broadcast %cst_47 : f32 to vector<2x128xf32>
    %195 = arith.addf %194, %193 : vector<2x128xf32>
    %196 = arith.divf %194, %195 : vector<2x128xf32>
    %197 = math.tanh %191 : vector<2x128xf32>
    %198 = vector.extract_strided_slice %196 {offsets = [0, 0], sizes = [2, 32], strides = [1, 1]} : vector<2x128xf32> to vector<2x32xf32>
    %199 = vector.extract_strided_slice %196 {offsets = [0, 32], sizes = [2, 32], strides = [1, 1]} : vector<2x128xf32> to vector<2x32xf32>
    %200 = vector.extract_strided_slice %196 {offsets = [0, 96], sizes = [2, 32], strides = [1, 1]} : vector<2x128xf32> to vector<2x32xf32>
    %201 = vector.extract_strided_slice %197 {offsets = [0, 64], sizes = [2, 32], strides = [1, 1]} : vector<2x128xf32> to vector<2x32xf32>
    %202 = arith.mulf %199, %144 : vector<2x32xf32>
    %203 = arith.mulf %198, %201 : vector<2x32xf32>
    %204 = arith.addf %202, %203 : vector<2x32xf32>
    %205 = math.tanh %204 : vector<2x32xf32>
    %206 = arith.mulf %200, %205 : vector<2x32xf32>
    %c1_48 = arith.constant 1 : index
    %c0_49 = arith.constant 0 : index
    %c0_50 = arith.constant 0 : index
    %207 = vector.load %arg8[%c1_48, %c0_49, %c0_50] : memref<8x2x32xf32, #tpu.memory_space<vmem>>, vector<1x2x32xf32>
    %208 = vector.shape_cast %207 : vector<1x2x32xf32> to vector<2x32xf32>
    %209 = vector.shape_cast %206 : vector<2x32xf32> to vector<1x2x32xf32>
    tpu.vector_store %arg8[%c1_48, %c0_49, %c0_50], %209 {strides = array<i32>} : memref<8x2x32xf32, #tpu.memory_space<vmem>>, vector<1x2x32xf32>,
    %210 = vector.extract_strided_slice %31 {offsets = [4, 0, 0], sizes = [1, 2, 128], strides = [1, 1, 1]} : vector<8x2x128xf32> to vector<1x2x128xf32>
    %211 = vector.shape_cast %210 : vector<1x2x128xf32> to vector<2x128xf32>
    %cst_51 = arith.constant dense<0.000000e+00> : vector<2x128xf32>
    %212 = tpu.matmul %168, %1, %cst_51 {dimension_numbers = #tpu.dot_dimension_numbers<[1], [0], [0], [1], [0, 0, 1, 1], [], []>} : vector<2x32xf32>, vector<32x128xf32>, vector<2x128xf32> -> vector<2x128xf32>
    %213 = arith.addf %211, %212 : vector<2x128xf32>
    %214 = arith.negf %213 : vector<2x128xf32>
    %215 = math.exp %214 : vector<2x128xf32>
    %cst_52 = arith.constant 1.000000e+00 : f32
    %216 = vector.broadcast %cst_52 : f32 to vector<2x128xf32>
    %217 = arith.addf %216, %215 : vector<2x128xf32>
    %218 = arith.divf %216, %217 : vector<2x128xf32>
    %219 = math.tanh %213 : vector<2x128xf32>
    %220 = vector.extract_strided_slice %218 {offsets = [0, 0], sizes = [2, 32], strides = [1, 1]} : vector<2x128xf32> to vector<2x32xf32>
    %221 = vector.extract_strided_slice %218 {offsets = [0, 32], sizes = [2, 32], strides = [1, 1]} : vector<2x128xf32> to vector<2x32xf32>
    %222 = vector.extract_strided_slice %218 {offsets = [0, 96], sizes = [2, 32], strides = [1, 1]} : vector<2x128xf32> to vector<2x32xf32>
    %223 = vector.extract_strided_slice %219 {offsets = [0, 64], sizes = [2, 32], strides = [1, 1]} : vector<2x128xf32> to vector<2x32xf32>
    %224 = arith.mulf %221, %166 : vector<2x32xf32>
    %225 = arith.mulf %220, %223 : vector<2x32xf32>
    %226 = arith.addf %224, %225 : vector<2x32xf32>
    %227 = math.tanh %226 : vector<2x32xf32>
    %228 = arith.mulf %222, %227 : vector<2x32xf32>
    %cst_53 = arith.constant dense<0.000000e+00> : vector<2x128xf32>
    %229 = tpu.matmul %168, %7, %cst_53 {dimension_numbers = #tpu.dot_dimension_numbers<[1], [0], [0], [1], [0, 0, 1, 1], [], []>} : vector<2x32xf32>, vector<32x128xf32>, vector<2x128xf32> -> vector<2x128xf32>
    %cst_54 = arith.constant dense<0.000000e+00> : vector<2x128xf32>
    %230 = tpu.matmul %187, %3, %cst_54 {dimension_numbers = #tpu.dot_dimension_numbers<[1], [0], [0], [1], [0, 0, 1, 1], [], []>} : vector<2x32xf32>, vector<32x128xf32>, vector<2x128xf32> -> vector<2x128xf32>
    %231 = arith.addf %229, %230 : vector<2x128xf32>
    %232 = arith.addf %231, %14 : vector<2x128xf32>
    %233 = arith.negf %232 : vector<2x128xf32>
    %234 = math.exp %233 : vector<2x128xf32>
    %cst_55 = arith.constant 1.000000e+00 : f32
    %235 = vector.broadcast %cst_55 : f32 to vector<2x128xf32>
    %236 = arith.addf %235, %234 : vector<2x128xf32>
    %237 = arith.divf %235, %236 : vector<2x128xf32>
    %238 = math.tanh %232 : vector<2x128xf32>
    %239 = vector.extract_strided_slice %237 {offsets = [0, 0], sizes = [2, 32], strides = [1, 1]} : vector<2x128xf32> to vector<2x32xf32>
    %240 = vector.extract_strided_slice %237 {offsets = [0, 32], sizes = [2, 32], strides = [1, 1]} : vector<2x128xf32> to vector<2x32xf32>
    %241 = vector.extract_strided_slice %237 {offsets = [0, 96], sizes = [2, 32], strides = [1, 1]} : vector<2x128xf32> to vector<2x32xf32>
    %242 = vector.extract_strided_slice %238 {offsets = [0, 64], sizes = [2, 32], strides = [1, 1]} : vector<2x128xf32> to vector<2x32xf32>
    %243 = arith.mulf %240, %185 : vector<2x32xf32>
    %244 = arith.mulf %239, %242 : vector<2x32xf32>
    %245 = arith.addf %243, %244 : vector<2x32xf32>
    %246 = math.tanh %245 : vector<2x32xf32>
    %247 = arith.mulf %241, %246 : vector<2x32xf32>
    %cst_56 = arith.constant dense<0.000000e+00> : vector<2x128xf32>
    %248 = tpu.matmul %187, %9, %cst_56 {dimension_numbers = #tpu.dot_dimension_numbers<[1], [0], [0], [1], [0, 0, 1, 1], [], []>} : vector<2x32xf32>, vector<32x128xf32>, vector<2x128xf32> -> vector<2x128xf32>
    %cst_57 = arith.constant dense<0.000000e+00> : vector<2x128xf32>
    %249 = tpu.matmul %206, %5, %cst_57 {dimension_numbers = #tpu.dot_dimension_numbers<[1], [0], [0], [1], [0, 0, 1, 1], [], []>} : vector<2x32xf32>, vector<32x128xf32>, vector<2x128xf32> -> vector<2x128xf32>
    %250 = arith.addf %248, %249 : vector<2x128xf32>
    %251 = arith.addf %250, %19 : vector<2x128xf32>
    %252 = arith.negf %251 : vector<2x128xf32>
    %253 = math.exp %252 : vector<2x128xf32>
    %cst_58 = arith.constant 1.000000e+00 : f32
    %254 = vector.broadcast %cst_58 : f32 to vector<2x128xf32>
    %255 = arith.addf %254, %253 : vector<2x128xf32>
    %256 = arith.divf %254, %255 : vector<2x128xf32>
    %257 = math.tanh %251 : vector<2x128xf32>
    %258 = vector.extract_strided_slice %256 {offsets = [0, 0], sizes = [2, 32], strides = [1, 1]} : vector<2x128xf32> to vector<2x32xf32>
    %259 = vector.extract_strided_slice %256 {offsets = [0, 32], sizes = [2, 32], strides = [1, 1]} : vector<2x128xf32> to vector<2x32xf32>
    %260 = vector.extract_strided_slice %256 {offsets = [0, 96], sizes = [2, 32], strides = [1, 1]} : vector<2x128xf32> to vector<2x32xf32>
    %261 = vector.extract_strided_slice %257 {offsets = [0, 64], sizes = [2, 32], strides = [1, 1]} : vector<2x128xf32> to vector<2x32xf32>
    %262 = arith.mulf %259, %204 : vector<2x32xf32>
    %263 = arith.mulf %258, %261 : vector<2x32xf32>
    %264 = arith.addf %262, %263 : vector<2x32xf32>
    %265 = math.tanh %264 : vector<2x32xf32>
    %266 = arith.mulf %260, %265 : vector<2x32xf32>
    %c2_59 = arith.constant 2 : index
    %c0_60 = arith.constant 0 : index
    %c0_61 = arith.constant 0 : index
    %267 = vector.load %arg8[%c2_59, %c0_60, %c0_61] : memref<8x2x32xf32, #tpu.memory_space<vmem>>, vector<1x2x32xf32>
    %268 = vector.shape_cast %267 : vector<1x2x32xf32> to vector<2x32xf32>
    %269 = vector.shape_cast %266 : vector<2x32xf32> to vector<1x2x32xf32>
    tpu.vector_store %arg8[%c2_59, %c0_60, %c0_61], %269 {strides = array<i32>} : memref<8x2x32xf32, #tpu.memory_space<vmem>>, vector<1x2x32xf32>,
    %270 = vector.extract_strided_slice %31 {offsets = [5, 0, 0], sizes = [1, 2, 128], strides = [1, 1, 1]} : vector<8x2x128xf32> to vector<1x2x128xf32>
    %271 = vector.shape_cast %270 : vector<1x2x128xf32> to vector<2x128xf32>
    %cst_62 = arith.constant dense<0.000000e+00> : vector<2x128xf32>
    %272 = tpu.matmul %228, %1, %cst_62 {dimension_numbers = #tpu.dot_dimension_numbers<[1], [0], [0], [1], [0, 0, 1, 1], [], []>} : vector<2x32xf32>, vector<32x128xf32>, vector<2x128xf32> -> vector<2x128xf32>
    %273 = arith.addf %271, %272 : vector<2x128xf32>
    %274 = arith.negf %273 : vector<2x128xf32>
    %275 = math.exp %274 : vector<2x128xf32>
    %cst_63 = arith.constant 1.000000e+00 : f32
    %276 = vector.broadcast %cst_63 : f32 to vector<2x128xf32>
    %277 = arith.addf %276, %275 : vector<2x128xf32>
    %278 = arith.divf %276, %277 : vector<2x128xf32>
    %279 = math.tanh %273 : vector<2x128xf32>
    %280 = vector.extract_strided_slice %278 {offsets = [0, 0], sizes = [2, 32], strides = [1, 1]} : vector<2x128xf32> to vector<2x32xf32>
    %281 = vector.extract_strided_slice %278 {offsets = [0, 32], sizes = [2, 32], strides = [1, 1]} : vector<2x128xf32> to vector<2x32xf32>
    %282 = vector.extract_strided_slice %278 {offsets = [0, 96], sizes = [2, 32], strides = [1, 1]} : vector<2x128xf32> to vector<2x32xf32>
    %283 = vector.extract_strided_slice %279 {offsets = [0, 64], sizes = [2, 32], strides = [1, 1]} : vector<2x128xf32> to vector<2x32xf32>
    %284 = arith.mulf %281, %226 : vector<2x32xf32>
    %285 = arith.mulf %280, %283 : vector<2x32xf32>
    %286 = arith.addf %284, %285 : vector<2x32xf32>
    %287 = math.tanh %286 : vector<2x32xf32>
    %288 = arith.mulf %282, %287 : vector<2x32xf32>
    %cst_64 = arith.constant dense<0.000000e+00> : vector<2x128xf32>
    %289 = tpu.matmul %228, %7, %cst_64 {dimension_numbers = #tpu.dot_dimension_numbers<[1], [0], [0], [1], [0, 0, 1, 1], [], []>} : vector<2x32xf32>, vector<32x128xf32>, vector<2x128xf32> -> vector<2x128xf32>
    %cst_65 = arith.constant dense<0.000000e+00> : vector<2x128xf32>
    %290 = tpu.matmul %247, %3, %cst_65 {dimension_numbers = #tpu.dot_dimension_numbers<[1], [0], [0], [1], [0, 0, 1, 1], [], []>} : vector<2x32xf32>, vector<32x128xf32>, vector<2x128xf32> -> vector<2x128xf32>
    %291 = arith.addf %289, %290 : vector<2x128xf32>
    %292 = arith.addf %291, %14 : vector<2x128xf32>
    %293 = arith.negf %292 : vector<2x128xf32>
    %294 = math.exp %293 : vector<2x128xf32>
    %cst_66 = arith.constant 1.000000e+00 : f32
    %295 = vector.broadcast %cst_66 : f32 to vector<2x128xf32>
    %296 = arith.addf %295, %294 : vector<2x128xf32>
    %297 = arith.divf %295, %296 : vector<2x128xf32>
    %298 = math.tanh %292 : vector<2x128xf32>
    %299 = vector.extract_strided_slice %297 {offsets = [0, 0], sizes = [2, 32], strides = [1, 1]} : vector<2x128xf32> to vector<2x32xf32>
    %300 = vector.extract_strided_slice %297 {offsets = [0, 32], sizes = [2, 32], strides = [1, 1]} : vector<2x128xf32> to vector<2x32xf32>
    %301 = vector.extract_strided_slice %297 {offsets = [0, 96], sizes = [2, 32], strides = [1, 1]} : vector<2x128xf32> to vector<2x32xf32>
    %302 = vector.extract_strided_slice %298 {offsets = [0, 64], sizes = [2, 32], strides = [1, 1]} : vector<2x128xf32> to vector<2x32xf32>
    %303 = arith.mulf %300, %245 : vector<2x32xf32>
    %304 = arith.mulf %299, %302 : vector<2x32xf32>
    %305 = arith.addf %303, %304 : vector<2x32xf32>
    %306 = math.tanh %305 : vector<2x32xf32>
    %307 = arith.mulf %301, %306 : vector<2x32xf32>
    %cst_67 = arith.constant dense<0.000000e+00> : vector<2x128xf32>
    %308 = tpu.matmul %247, %9, %cst_67 {dimension_numbers = #tpu.dot_dimension_numbers<[1], [0], [0], [1], [0, 0, 1, 1], [], []>} : vector<2x32xf32>, vector<32x128xf32>, vector<2x128xf32> -> vector<2x128xf32>
    %cst_68 = arith.constant dense<0.000000e+00> : vector<2x128xf32>
    %309 = tpu.matmul %266, %5, %cst_68 {dimension_numbers = #tpu.dot_dimension_numbers<[1], [0], [0], [1], [0, 0, 1, 1], [], []>} : vector<2x32xf32>, vector<32x128xf32>, vector<2x128xf32> -> vector<2x128xf32>
    %310 = arith.addf %308, %309 : vector<2x128xf32>
    %311 = arith.addf %310, %19 : vector<2x128xf32>
    %312 = arith.negf %311 : vector<2x128xf32>
    %313 = math.exp %312 : vector<2x128xf32>
    %cst_69 = arith.constant 1.000000e+00 : f32
    %314 = vector.broadcast %cst_69 : f32 to vector<2x128xf32>
    %315 = arith.addf %314, %313 : vector<2x128xf32>
    %316 = arith.divf %314, %315 : vector<2x128xf32>
    %317 = math.tanh %311 : vector<2x128xf32>
    %318 = vector.extract_strided_slice %316 {offsets = [0, 0], sizes = [2, 32], strides = [1, 1]} : vector<2x128xf32> to vector<2x32xf32>
    %319 = vector.extract_strided_slice %316 {offsets = [0, 32], sizes = [2, 32], strides = [1, 1]} : vector<2x128xf32> to vector<2x32xf32>
    %320 = vector.extract_strided_slice %316 {offsets = [0, 96], sizes = [2, 32], strides = [1, 1]} : vector<2x128xf32> to vector<2x32xf32>
    %321 = vector.extract_strided_slice %317 {offsets = [0, 64], sizes = [2, 32], strides = [1, 1]} : vector<2x128xf32> to vector<2x32xf32>
    %322 = arith.mulf %319, %264 : vector<2x32xf32>
    %323 = arith.mulf %318, %321 : vector<2x32xf32>
    %324 = arith.addf %322, %323 : vector<2x32xf32>
    %325 = math.tanh %324 : vector<2x32xf32>
    %326 = arith.mulf %320, %325 : vector<2x32xf32>
    %c3 = arith.constant 3 : index
    %c0_70 = arith.constant 0 : index
    %c0_71 = arith.constant 0 : index
    %327 = vector.load %arg8[%c3, %c0_70, %c0_71] : memref<8x2x32xf32, #tpu.memory_space<vmem>>, vector<1x2x32xf32>
    %328 = vector.shape_cast %327 : vector<1x2x32xf32> to vector<2x32xf32>
    %329 = vector.shape_cast %326 : vector<2x32xf32> to vector<1x2x32xf32>
    tpu.vector_store %arg8[%c3, %c0_70, %c0_71], %329 {strides = array<i32>} : memref<8x2x32xf32, #tpu.memory_space<vmem>>, vector<1x2x32xf32>,
    %330 = vector.extract_strided_slice %31 {offsets = [6, 0, 0], sizes = [1, 2, 128], strides = [1, 1, 1]} : vector<8x2x128xf32> to vector<1x2x128xf32>
    %331 = vector.shape_cast %330 : vector<1x2x128xf32> to vector<2x128xf32>
    %cst_72 = arith.constant dense<0.000000e+00> : vector<2x128xf32>
    %332 = tpu.matmul %288, %1, %cst_72 {dimension_numbers = #tpu.dot_dimension_numbers<[1], [0], [0], [1], [0, 0, 1, 1], [], []>} : vector<2x32xf32>, vector<32x128xf32>, vector<2x128xf32> -> vector<2x128xf32>
    %333 = arith.addf %331, %332 : vector<2x128xf32>
    %334 = arith.negf %333 : vector<2x128xf32>
    %335 = math.exp %334 : vector<2x128xf32>
    %cst_73 = arith.constant 1.000000e+00 : f32
    %336 = vector.broadcast %cst_73 : f32 to vector<2x128xf32>
    %337 = arith.addf %336, %335 : vector<2x128xf32>
    %338 = arith.divf %336, %337 : vector<2x128xf32>
    %339 = math.tanh %333 : vector<2x128xf32>
    %340 = vector.extract_strided_slice %338 {offsets = [0, 0], sizes = [2, 32], strides = [1, 1]} : vector<2x128xf32> to vector<2x32xf32>
    %341 = vector.extract_strided_slice %338 {offsets = [0, 32], sizes = [2, 32], strides = [1, 1]} : vector<2x128xf32> to vector<2x32xf32>
    %342 = vector.extract_strided_slice %338 {offsets = [0, 96], sizes = [2, 32], strides = [1, 1]} : vector<2x128xf32> to vector<2x32xf32>
    %343 = vector.extract_strided_slice %339 {offsets = [0, 64], sizes = [2, 32], strides = [1, 1]} : vector<2x128xf32> to vector<2x32xf32>
    %344 = arith.mulf %341, %286 : vector<2x32xf32>
    %345 = arith.mulf %340, %343 : vector<2x32xf32>
    %346 = arith.addf %344, %345 : vector<2x32xf32>
    %347 = math.tanh %346 : vector<2x32xf32>
    %348 = arith.mulf %342, %347 : vector<2x32xf32>
    %cst_74 = arith.constant dense<0.000000e+00> : vector<2x128xf32>
    %349 = tpu.matmul %288, %7, %cst_74 {dimension_numbers = #tpu.dot_dimension_numbers<[1], [0], [0], [1], [0, 0, 1, 1], [], []>} : vector<2x32xf32>, vector<32x128xf32>, vector<2x128xf32> -> vector<2x128xf32>
    %cst_75 = arith.constant dense<0.000000e+00> : vector<2x128xf32>
    %350 = tpu.matmul %307, %3, %cst_75 {dimension_numbers = #tpu.dot_dimension_numbers<[1], [0], [0], [1], [0, 0, 1, 1], [], []>} : vector<2x32xf32>, vector<32x128xf32>, vector<2x128xf32> -> vector<2x128xf32>
    %351 = arith.addf %349, %350 : vector<2x128xf32>
    %352 = arith.addf %351, %14 : vector<2x128xf32>
    %353 = arith.negf %352 : vector<2x128xf32>
    %354 = math.exp %353 : vector<2x128xf32>
    %cst_76 = arith.constant 1.000000e+00 : f32
    %355 = vector.broadcast %cst_76 : f32 to vector<2x128xf32>
    %356 = arith.addf %355, %354 : vector<2x128xf32>
    %357 = arith.divf %355, %356 : vector<2x128xf32>
    %358 = math.tanh %352 : vector<2x128xf32>
    %359 = vector.extract_strided_slice %357 {offsets = [0, 0], sizes = [2, 32], strides = [1, 1]} : vector<2x128xf32> to vector<2x32xf32>
    %360 = vector.extract_strided_slice %357 {offsets = [0, 32], sizes = [2, 32], strides = [1, 1]} : vector<2x128xf32> to vector<2x32xf32>
    %361 = vector.extract_strided_slice %357 {offsets = [0, 96], sizes = [2, 32], strides = [1, 1]} : vector<2x128xf32> to vector<2x32xf32>
    %362 = vector.extract_strided_slice %358 {offsets = [0, 64], sizes = [2, 32], strides = [1, 1]} : vector<2x128xf32> to vector<2x32xf32>
    %363 = arith.mulf %360, %305 : vector<2x32xf32>
    %364 = arith.mulf %359, %362 : vector<2x32xf32>
    %365 = arith.addf %363, %364 : vector<2x32xf32>
    %366 = math.tanh %365 : vector<2x32xf32>
    %367 = arith.mulf %361, %366 : vector<2x32xf32>
    %cst_77 = arith.constant dense<0.000000e+00> : vector<2x128xf32>
    %368 = tpu.matmul %307, %9, %cst_77 {dimension_numbers = #tpu.dot_dimension_numbers<[1], [0], [0], [1], [0, 0, 1, 1], [], []>} : vector<2x32xf32>, vector<32x128xf32>, vector<2x128xf32> -> vector<2x128xf32>
    %cst_78 = arith.constant dense<0.000000e+00> : vector<2x128xf32>
    %369 = tpu.matmul %326, %5, %cst_78 {dimension_numbers = #tpu.dot_dimension_numbers<[1], [0], [0], [1], [0, 0, 1, 1], [], []>} : vector<2x32xf32>, vector<32x128xf32>, vector<2x128xf32> -> vector<2x128xf32>
    %370 = arith.addf %368, %369 : vector<2x128xf32>
    %371 = arith.addf %370, %19 : vector<2x128xf32>
    %372 = arith.negf %371 : vector<2x128xf32>
    %373 = math.exp %372 : vector<2x128xf32>
    %cst_79 = arith.constant 1.000000e+00 : f32
    %374 = vector.broadcast %cst_79 : f32 to vector<2x128xf32>
    %375 = arith.addf %374, %373 : vector<2x128xf32>
    %376 = arith.divf %374, %375 : vector<2x128xf32>
    %377 = math.tanh %371 : vector<2x128xf32>
    %378 = vector.extract_strided_slice %376 {offsets = [0, 0], sizes = [2, 32], strides = [1, 1]} : vector<2x128xf32> to vector<2x32xf32>
    %379 = vector.extract_strided_slice %376 {offsets = [0, 32], sizes = [2, 32], strides = [1, 1]} : vector<2x128xf32> to vector<2x32xf32>
    %380 = vector.extract_strided_slice %376 {offsets = [0, 96], sizes = [2, 32], strides = [1, 1]} : vector<2x128xf32> to vector<2x32xf32>
    %381 = vector.extract_strided_slice %377 {offsets = [0, 64], sizes = [2, 32], strides = [1, 1]} : vector<2x128xf32> to vector<2x32xf32>
    %382 = arith.mulf %379, %324 : vector<2x32xf32>
    %383 = arith.mulf %378, %381 : vector<2x32xf32>
    %384 = arith.addf %382, %383 : vector<2x32xf32>
    %385 = math.tanh %384 : vector<2x32xf32>
    %386 = arith.mulf %380, %385 : vector<2x32xf32>
    %c4 = arith.constant 4 : index
    %c0_80 = arith.constant 0 : index
    %c0_81 = arith.constant 0 : index
    %387 = vector.load %arg8[%c4, %c0_80, %c0_81] : memref<8x2x32xf32, #tpu.memory_space<vmem>>, vector<1x2x32xf32>
    %388 = vector.shape_cast %387 : vector<1x2x32xf32> to vector<2x32xf32>
    %389 = vector.shape_cast %386 : vector<2x32xf32> to vector<1x2x32xf32>
    tpu.vector_store %arg8[%c4, %c0_80, %c0_81], %389 {strides = array<i32>} : memref<8x2x32xf32, #tpu.memory_space<vmem>>, vector<1x2x32xf32>,
    %390 = vector.extract_strided_slice %31 {offsets = [7, 0, 0], sizes = [1, 2, 128], strides = [1, 1, 1]} : vector<8x2x128xf32> to vector<1x2x128xf32>
    %391 = vector.shape_cast %390 : vector<1x2x128xf32> to vector<2x128xf32>
    %cst_82 = arith.constant dense<0.000000e+00> : vector<2x128xf32>
    %392 = tpu.matmul %348, %1, %cst_82 {dimension_numbers = #tpu.dot_dimension_numbers<[1], [0], [0], [1], [0, 0, 1, 1], [], []>} : vector<2x32xf32>, vector<32x128xf32>, vector<2x128xf32> -> vector<2x128xf32>
    %393 = arith.addf %391, %392 : vector<2x128xf32>
    %394 = arith.negf %393 : vector<2x128xf32>
    %395 = math.exp %394 : vector<2x128xf32>
    %cst_83 = arith.constant 1.000000e+00 : f32
    %396 = vector.broadcast %cst_83 : f32 to vector<2x128xf32>
    %397 = arith.addf %396, %395 : vector<2x128xf32>
    %398 = arith.divf %396, %397 : vector<2x128xf32>
    %399 = math.tanh %393 : vector<2x128xf32>
    %400 = vector.extract_strided_slice %398 {offsets = [0, 0], sizes = [2, 32], strides = [1, 1]} : vector<2x128xf32> to vector<2x32xf32>
    %401 = vector.extract_strided_slice %398 {offsets = [0, 32], sizes = [2, 32], strides = [1, 1]} : vector<2x128xf32> to vector<2x32xf32>
    %402 = vector.extract_strided_slice %398 {offsets = [0, 96], sizes = [2, 32], strides = [1, 1]} : vector<2x128xf32> to vector<2x32xf32>
    %403 = vector.extract_strided_slice %399 {offsets = [0, 64], sizes = [2, 32], strides = [1, 1]} : vector<2x128xf32> to vector<2x32xf32>
    %404 = arith.mulf %401, %346 : vector<2x32xf32>
    %405 = arith.mulf %400, %403 : vector<2x32xf32>
    %406 = arith.addf %404, %405 : vector<2x32xf32>
    %407 = math.tanh %406 : vector<2x32xf32>
    %408 = arith.mulf %402, %407 : vector<2x32xf32>
    %cst_84 = arith.constant dense<0.000000e+00> : vector<2x128xf32>
    %409 = tpu.matmul %348, %7, %cst_84 {dimension_numbers = #tpu.dot_dimension_numbers<[1], [0], [0], [1], [0, 0, 1, 1], [], []>} : vector<2x32xf32>, vector<32x128xf32>, vector<2x128xf32> -> vector<2x128xf32>
    %cst_85 = arith.constant dense<0.000000e+00> : vector<2x128xf32>
    %410 = tpu.matmul %367, %3, %cst_85 {dimension_numbers = #tpu.dot_dimension_numbers<[1], [0], [0], [1], [0, 0, 1, 1], [], []>} : vector<2x32xf32>, vector<32x128xf32>, vector<2x128xf32> -> vector<2x128xf32>
    %411 = arith.addf %409, %410 : vector<2x128xf32>
    %412 = arith.addf %411, %14 : vector<2x128xf32>
    %413 = arith.negf %412 : vector<2x128xf32>
    %414 = math.exp %413 : vector<2x128xf32>
    %cst_86 = arith.constant 1.000000e+00 : f32
    %415 = vector.broadcast %cst_86 : f32 to vector<2x128xf32>
    %416 = arith.addf %415, %414 : vector<2x128xf32>
    %417 = arith.divf %415, %416 : vector<2x128xf32>
    %418 = math.tanh %412 : vector<2x128xf32>
    %419 = vector.extract_strided_slice %417 {offsets = [0, 0], sizes = [2, 32], strides = [1, 1]} : vector<2x128xf32> to vector<2x32xf32>
    %420 = vector.extract_strided_slice %417 {offsets = [0, 32], sizes = [2, 32], strides = [1, 1]} : vector<2x128xf32> to vector<2x32xf32>
    %421 = vector.extract_strided_slice %417 {offsets = [0, 96], sizes = [2, 32], strides = [1, 1]} : vector<2x128xf32> to vector<2x32xf32>
    %422 = vector.extract_strided_slice %418 {offsets = [0, 64], sizes = [2, 32], strides = [1, 1]} : vector<2x128xf32> to vector<2x32xf32>
    %423 = arith.mulf %420, %365 : vector<2x32xf32>
    %424 = arith.mulf %419, %422 : vector<2x32xf32>
    %425 = arith.addf %423, %424 : vector<2x32xf32>
    %426 = math.tanh %425 : vector<2x32xf32>
    %427 = arith.mulf %421, %426 : vector<2x32xf32>
    %cst_87 = arith.constant dense<0.000000e+00> : vector<2x128xf32>
    %428 = tpu.matmul %367, %9, %cst_87 {dimension_numbers = #tpu.dot_dimension_numbers<[1], [0], [0], [1], [0, 0, 1, 1], [], []>} : vector<2x32xf32>, vector<32x128xf32>, vector<2x128xf32> -> vector<2x128xf32>
    %cst_88 = arith.constant dense<0.000000e+00> : vector<2x128xf32>
    %429 = tpu.matmul %386, %5, %cst_88 {dimension_numbers = #tpu.dot_dimension_numbers<[1], [0], [0], [1], [0, 0, 1, 1], [], []>} : vector<2x32xf32>, vector<32x128xf32>, vector<2x128xf32> -> vector<2x128xf32>
    %430 = arith.addf %428, %429 : vector<2x128xf32>
    %431 = arith.addf %430, %19 : vector<2x128xf32>
    %432 = arith.negf %431 : vector<2x128xf32>
    %433 = math.exp %432 : vector<2x128xf32>
    %cst_89 = arith.constant 1.000000e+00 : f32
    %434 = vector.broadcast %cst_89 : f32 to vector<2x128xf32>
    %435 = arith.addf %434, %433 : vector<2x128xf32>
    %436 = arith.divf %434, %435 : vector<2x128xf32>
    %437 = math.tanh %431 : vector<2x128xf32>
    %438 = vector.extract_strided_slice %436 {offsets = [0, 0], sizes = [2, 32], strides = [1, 1]} : vector<2x128xf32> to vector<2x32xf32>
    %439 = vector.extract_strided_slice %436 {offsets = [0, 32], sizes = [2, 32], strides = [1, 1]} : vector<2x128xf32> to vector<2x32xf32>
    %440 = vector.extract_strided_slice %436 {offsets = [0, 96], sizes = [2, 32], strides = [1, 1]} : vector<2x128xf32> to vector<2x32xf32>
    %441 = vector.extract_strided_slice %437 {offsets = [0, 64], sizes = [2, 32], strides = [1, 1]} : vector<2x128xf32> to vector<2x32xf32>
    %442 = arith.mulf %439, %384 : vector<2x32xf32>
    %443 = arith.mulf %438, %441 : vector<2x32xf32>
    %444 = arith.addf %442, %443 : vector<2x32xf32>
    %445 = math.tanh %444 : vector<2x32xf32>
    %446 = arith.mulf %440, %445 : vector<2x32xf32>
    %c5 = arith.constant 5 : index
    %c0_90 = arith.constant 0 : index
    %c0_91 = arith.constant 0 : index
    %447 = vector.load %arg8[%c5, %c0_90, %c0_91] : memref<8x2x32xf32, #tpu.memory_space<vmem>>, vector<1x2x32xf32>
    %448 = vector.shape_cast %447 : vector<1x2x32xf32> to vector<2x32xf32>
    %449 = vector.shape_cast %446 : vector<2x32xf32> to vector<1x2x32xf32>
    tpu.vector_store %arg8[%c5, %c0_90, %c0_91], %449 {strides = array<i32>} : memref<8x2x32xf32, #tpu.memory_space<vmem>>, vector<1x2x32xf32>,
    %cst_92 = arith.constant dense<0.000000e+00> : vector<2x128xf32>
    %450 = tpu.matmul %408, %7, %cst_92 {dimension_numbers = #tpu.dot_dimension_numbers<[1], [0], [0], [1], [0, 0, 1, 1], [], []>} : vector<2x32xf32>, vector<32x128xf32>, vector<2x128xf32> -> vector<2x128xf32>
    %cst_93 = arith.constant dense<0.000000e+00> : vector<2x128xf32>
    %451 = tpu.matmul %427, %3, %cst_93 {dimension_numbers = #tpu.dot_dimension_numbers<[1], [0], [0], [1], [0, 0, 1, 1], [], []>} : vector<2x32xf32>, vector<32x128xf32>, vector<2x128xf32> -> vector<2x128xf32>
    %452 = arith.addf %450, %451 : vector<2x128xf32>
    %453 = arith.addf %452, %14 : vector<2x128xf32>
    %454 = arith.negf %453 : vector<2x128xf32>
    %455 = math.exp %454 : vector<2x128xf32>
    %cst_94 = arith.constant 1.000000e+00 : f32
    %456 = vector.broadcast %cst_94 : f32 to vector<2x128xf32>
    %457 = arith.addf %456, %455 : vector<2x128xf32>
    %458 = arith.divf %456, %457 : vector<2x128xf32>
    %459 = math.tanh %453 : vector<2x128xf32>
    %460 = vector.extract_strided_slice %458 {offsets = [0, 0], sizes = [2, 32], strides = [1, 1]} : vector<2x128xf32> to vector<2x32xf32>
    %461 = vector.extract_strided_slice %458 {offsets = [0, 32], sizes = [2, 32], strides = [1, 1]} : vector<2x128xf32> to vector<2x32xf32>
    %462 = vector.extract_strided_slice %458 {offsets = [0, 96], sizes = [2, 32], strides = [1, 1]} : vector<2x128xf32> to vector<2x32xf32>
    %463 = vector.extract_strided_slice %459 {offsets = [0, 64], sizes = [2, 32], strides = [1, 1]} : vector<2x128xf32> to vector<2x32xf32>
    %464 = arith.mulf %461, %425 : vector<2x32xf32>
    %465 = arith.mulf %460, %463 : vector<2x32xf32>
    %466 = arith.addf %464, %465 : vector<2x32xf32>
    %467 = math.tanh %466 : vector<2x32xf32>
    %468 = arith.mulf %462, %467 : vector<2x32xf32>
    %cst_95 = arith.constant dense<0.000000e+00> : vector<2x128xf32>
    %469 = tpu.matmul %427, %9, %cst_95 {dimension_numbers = #tpu.dot_dimension_numbers<[1], [0], [0], [1], [0, 0, 1, 1], [], []>} : vector<2x32xf32>, vector<32x128xf32>, vector<2x128xf32> -> vector<2x128xf32>
    %cst_96 = arith.constant dense<0.000000e+00> : vector<2x128xf32>
    %470 = tpu.matmul %446, %5, %cst_96 {dimension_numbers = #tpu.dot_dimension_numbers<[1], [0], [0], [1], [0, 0, 1, 1], [], []>} : vector<2x32xf32>, vector<32x128xf32>, vector<2x128xf32> -> vector<2x128xf32>
    %471 = arith.addf %469, %470 : vector<2x128xf32>
    %472 = arith.addf %471, %19 : vector<2x128xf32>
    %473 = arith.negf %472 : vector<2x128xf32>
    %474 = math.exp %473 : vector<2x128xf32>
    %cst_97 = arith.constant 1.000000e+00 : f32
    %475 = vector.broadcast %cst_97 : f32 to vector<2x128xf32>
    %476 = arith.addf %475, %474 : vector<2x128xf32>
    %477 = arith.divf %475, %476 : vector<2x128xf32>
    %478 = math.tanh %472 : vector<2x128xf32>
    %479 = vector.extract_strided_slice %477 {offsets = [0, 0], sizes = [2, 32], strides = [1, 1]} : vector<2x128xf32> to vector<2x32xf32>
    %480 = vector.extract_strided_slice %477 {offsets = [0, 32], sizes = [2, 32], strides = [1, 1]} : vector<2x128xf32> to vector<2x32xf32>
    %481 = vector.extract_strided_slice %477 {offsets = [0, 96], sizes = [2, 32], strides = [1, 1]} : vector<2x128xf32> to vector<2x32xf32>
    %482 = vector.extract_strided_slice %478 {offsets = [0, 64], sizes = [2, 32], strides = [1, 1]} : vector<2x128xf32> to vector<2x32xf32>
    %483 = arith.mulf %480, %444 : vector<2x32xf32>
    %484 = arith.mulf %479, %482 : vector<2x32xf32>
    %485 = arith.addf %483, %484 : vector<2x32xf32>
    %486 = math.tanh %485 : vector<2x32xf32>
    %487 = arith.mulf %481, %486 : vector<2x32xf32>
    %c6 = arith.constant 6 : index
    %c0_98 = arith.constant 0 : index
    %c0_99 = arith.constant 0 : index
    %488 = vector.load %arg8[%c6, %c0_98, %c0_99] : memref<8x2x32xf32, #tpu.memory_space<vmem>>, vector<1x2x32xf32>
    %489 = vector.shape_cast %488 : vector<1x2x32xf32> to vector<2x32xf32>
    %490 = vector.shape_cast %487 : vector<2x32xf32> to vector<1x2x32xf32>
    tpu.vector_store %arg8[%c6, %c0_98, %c0_99], %490 {strides = array<i32>} : memref<8x2x32xf32, #tpu.memory_space<vmem>>, vector<1x2x32xf32>,
    %cst_100 = arith.constant dense<0.000000e+00> : vector<2x128xf32>
    %491 = tpu.matmul %468, %9, %cst_100 {dimension_numbers = #tpu.dot_dimension_numbers<[1], [0], [0], [1], [0, 0, 1, 1], [], []>} : vector<2x32xf32>, vector<32x128xf32>, vector<2x128xf32> -> vector<2x128xf32>
    %cst_101 = arith.constant dense<0.000000e+00> : vector<2x128xf32>
    %492 = tpu.matmul %487, %5, %cst_101 {dimension_numbers = #tpu.dot_dimension_numbers<[1], [0], [0], [1], [0, 0, 1, 1], [], []>} : vector<2x32xf32>, vector<32x128xf32>, vector<2x128xf32> -> vector<2x128xf32>
    %493 = arith.addf %491, %492 : vector<2x128xf32>
    %494 = arith.addf %493, %19 : vector<2x128xf32>
    %495 = arith.negf %494 : vector<2x128xf32>
    %496 = math.exp %495 : vector<2x128xf32>
    %cst_102 = arith.constant 1.000000e+00 : f32
    %497 = vector.broadcast %cst_102 : f32 to vector<2x128xf32>
    %498 = arith.addf %497, %496 : vector<2x128xf32>
    %499 = arith.divf %497, %498 : vector<2x128xf32>
    %500 = math.tanh %494 : vector<2x128xf32>
    %501 = vector.extract_strided_slice %499 {offsets = [0, 0], sizes = [2, 32], strides = [1, 1]} : vector<2x128xf32> to vector<2x32xf32>
    %502 = vector.extract_strided_slice %499 {offsets = [0, 32], sizes = [2, 32], strides = [1, 1]} : vector<2x128xf32> to vector<2x32xf32>
    %503 = vector.extract_strided_slice %499 {offsets = [0, 96], sizes = [2, 32], strides = [1, 1]} : vector<2x128xf32> to vector<2x32xf32>
    %504 = vector.extract_strided_slice %500 {offsets = [0, 64], sizes = [2, 32], strides = [1, 1]} : vector<2x128xf32> to vector<2x32xf32>
    %505 = arith.mulf %502, %485 : vector<2x32xf32>
    %506 = arith.mulf %501, %504 : vector<2x32xf32>
    %507 = arith.addf %505, %506 : vector<2x32xf32>
    %508 = math.tanh %507 : vector<2x32xf32>
    %509 = arith.mulf %503, %508 : vector<2x32xf32>
    %c7 = arith.constant 7 : index
    %c0_103 = arith.constant 0 : index
    %c0_104 = arith.constant 0 : index
    %510 = vector.load %arg8[%c7, %c0_103, %c0_104] : memref<8x2x32xf32, #tpu.memory_space<vmem>>, vector<1x2x32xf32>
    %511 = vector.shape_cast %510 : vector<1x2x32xf32> to vector<2x32xf32>
    %512 = vector.shape_cast %509 : vector<2x32xf32> to vector<1x2x32xf32>
    tpu.vector_store %arg8[%c7, %c0_103, %c0_104], %512 {strides = array<i32>} : memref<8x2x32xf32, #tpu.memory_space<vmem>>, vector<1x2x32xf32>,
    %c0_105 = arith.constant 0 : index
    %c0_106 = arith.constant 0 : index
    %513 = vector.load %arg5[%c0_105, %c0_106] : memref<1x32xf32, #tpu.memory_space<vmem>>, vector<1x32xf32>
    %514 = vector.shape_cast %513 : vector<1x32xf32> to vector<32xf32>
    %c0_107 = arith.constant 0 : index
    %c0_108 = arith.constant 0 : index
    %515 = memref.load %arg6[%c0_107, %c0_108] : memref<1x1xf32, #tpu.memory_space<smem>>
    %c0_109 = arith.constant 0 : index
    %c0_110 = arith.constant 0 : index
    %c0_111 = arith.constant 0 : index
    %516 = vector.load %arg8[%c0_109, %c0_110, %c0_111] : memref<8x2x32xf32, #tpu.memory_space<vmem>>, vector<8x2x32xf32>
    %517 = vector.shape_cast %514 : vector<32xf32> to vector<1x1x32xf32>
    %518 = vector.broadcast %517 : vector<1x1x32xf32> to vector<8x2x32xf32>
    %519 = arith.mulf %516, %518 : vector<8x2x32xf32>
    %cst_112 = arith.constant dense<0.000000e+00> : vector<8x2xf32>
    %520 = vector.multi_reduction <add>, %519, %cst_112 [2] : vector<8x2x32xf32> to vector<8x2xf32>
    %521 = vector.broadcast %515 : f32 to vector<8x2xf32>
    %522 = arith.addf %520, %521 : vector<8x2xf32>
    %c0_113 = arith.constant 0 : index
    %c0_114 = arith.constant 0 : index
    %523 = vector.load %arg7[%c0_113, %c0_114] : memref<8x2xf32, #tpu.memory_space<vmem>>, vector<8x2xf32>
    tpu.vector_store %arg7[%c0_113, %c0_114], %522 {strides = array<i32>} : memref<8x2xf32, #tpu.memory_space<vmem>>, vector<8x2xf32>,
    return
  }
}

</mosaic_0001>

<llo_original>
// kernel: tpu_custom_call.1
$region0: #{tpu_custom_call.1}
  #allocation0 [shape = 'u32[]', space=smem, size = 0x4, offset = 0x4, fixed_abs, tag = 'smem constant byte address 0x4 - core index']
  #allocation1 [shape = 'u32[72,128]{1,0:T(1,128)}', space=vmem, size = 0x9000, scoped, tag = 'internal scratch']
  #allocation2 [shape = 'f32[8,2,32]{2,1,0:T(2,128)}', space=vmem, size = 0x2000, scoped, tag = 'scratch operand']
  #allocation3 [shape = 'f32[1,1]{1,0:T(1,128)S(6)}', space=smem, size = 0x200, scoped, tag = 'scoped memory for tpu_custom_call.1']
  %s0 = inlined_call_operand.vmem [shape: f32[8,2], index: 0, kind: input, shape index: {}]
  %s1 = inlined_call_operand.vmem [shape: f32[1,128], index: 1, kind: input, shape index: {}]
  %s2 = inlined_call_operand.hbm [shape: f32[2,32,128], index: 2, kind: input, shape index: {}]
  %s3 = inlined_call_operand.hbm [shape: f32[3,32,128], index: 3, kind: input, shape index: {}]
  %s4 = inlined_call_operand.vmem [shape: f32[3,128], index: 4, kind: input, shape index: {}]
  %s5 = inlined_call_operand.vmem [shape: f32[1,32], index: 5, kind: input, shape index: {}]
  %s6 = inlined_call_operand.<no memory space> [shape: f32[1,1], index: 6, kind: input, shape index: {}]
  %s7 = inlined_call_operand.vmem [shape: f32[8,2], index: 7, kind: output, shape index: {}]
  %s8 = sld [smem:[#allocation0]]
  $region46: #{tpu_custom_call.1} parent=0
    _
  %s10 = ssub.s32 1, %s8
  %s11 = scalar_select 0, %s10, %s8
  %12 = sst [smem:[#allocation3]] %s6
  $region1: #{tpu_custom_call.1} parent=0
    #allocation4 [shape = 'u8[32768]{0}', space=vmem, size = 0x8000, scoped, tag = 'input window, operand 2, single buffered']
    #allocation5 [shape = 's32[1]{0}', space=sflag, size = 0x4, scoped, tag = 'scoped memory for tpu_custom_call.1']
    #allocation6 [shape = 'u8[49152]{0}', space=vmem, size = 0xc000, scoped, tag = 'input window, operand 3, single buffered']
    #allocation7 [shape = 's32[1]{0}', space=sflag, size = 0x4, scoped, tag = 'scoped memory for tpu_custom_call.1']
    %13 = vsyncpa [#allocation5], 0
    %14 = vsyncpa [#allocation7], 0
    // Predicated region
    $region2: #{tpu_custom_call.1} parent=1 // pred_check
      _
    $region3: #{tpu_custom_call.1} parent=1 // pred_check_branch
      %16 = sbr.rel (0) target = $region5
    $region4: #{tpu_custom_call.1} parent=1 // pred_region
      _
    $region5: #{tpu_custom_call.1} parent=1 // pred_fallthru
      _
    // Predicated region
    $region6: #{tpu_custom_call.1} parent=1 // pred_check
      _
    $region7: #{tpu_custom_call.1} parent=1 // pred_check_branch
      %18 = sbr.rel (0) target = $region9
    $region8: #{tpu_custom_call.1} parent=1 // pred_region
      _
    $region9: #{tpu_custom_call.1} parent=1 // pred_fallthru
      _
    // Predicated region
    $region10: #{tpu_custom_call.1} parent=1 // pred_check
      _
    $region11: #{tpu_custom_call.1} parent=1 // pred_check_branch
      %20 = sbr.rel (0) target = $region13
    $region12: #{tpu_custom_call.1} parent=1 // pred_region
      %22 = vsyncadd [#allocation5], 0
      %s23 = sshll.u32 %s2, 4
      %s24 = int_to_ptr.hbm [resolvable:$true] %s23
      %s25 = sshll.u32 [#allocation4], 4
      %s26 = int_to_ptr.vmem [resolvable:$true] %s25
      %31 = dma.hbm_to_vmem [thread:$0]  %s24, 1024, %s26, [#allocation5], 128, 128, 8
    $region13: #{tpu_custom_call.1} parent=1 // pred_fallthru
      _
    // Predicated region
    $region14: #{tpu_custom_call.1} parent=1 // pred_check
      _
    $region15: #{tpu_custom_call.1} parent=1 // pred_check_branch
      %33 = sbr.rel (0) target = $region17
    $region16: #{tpu_custom_call.1} parent=1 // pred_region
      %35 = vsyncadd [#allocation7], 0
      %s36 = sshll.u32 %s3, 4
      %s37 = int_to_ptr.hbm [resolvable:$true] %s36
      %s38 = sshll.u32 [#allocation6], 4
      %s39 = int_to_ptr.vmem [resolvable:$true] %s38
      %44 = dma.hbm_to_vmem [thread:$0]  %s37, 1536, %s39, [#allocation7], 128, 128, 8
    $region17: #{tpu_custom_call.1} parent=1 // pred_fallthru
      _
    // Predicated region
    $region18: #{tpu_custom_call.1} parent=1 // pred_check
      _
    $region19: #{tpu_custom_call.1} parent=1 // pred_check_branch
      %46 = sbr.rel (0) target = $region21
    $region20: #{tpu_custom_call.1} parent=1 // pred_region
      _
    $region21: #{tpu_custom_call.1} parent=1 // pred_fallthru
      _
    // Predicated region
    $region22: #{tpu_custom_call.1} parent=1 // pred_check
      _
    $region23: #{tpu_custom_call.1} parent=1 // pred_check_branch
      %48 = sbr.rel (0) target = $region25
    $region24: #{tpu_custom_call.1} parent=1 // pred_region
      _
    $region25: #{tpu_custom_call.1} parent=1 // pred_fallthru
      _
    // Predicated region
    $region26: #{tpu_custom_call.1} parent=1 // pred_check
      _
    $region27: #{tpu_custom_call.1} parent=1 // pred_check_branch
      %50 = sbr.rel (0) target = $region29
    $region28: #{tpu_custom_call.1} parent=1 // pred_region
      _
    $region29: #{tpu_custom_call.1} parent=1 // pred_fallthru
      _
    // Predicated region
    $region30: #{tpu_custom_call.1} parent=1 // pred_check
      _
    $region31: #{tpu_custom_call.1} parent=1 // pred_check_branch
      %52 = sbr.rel (0) target = $region33
    $region32: #{tpu_custom_call.1} parent=1 // pred_region
      %54 = dma.done [#allocation5], 1024
    $region33: #{tpu_custom_call.1} parent=1 // pred_fallthru
      _
    // Predicated region
    $region34: #{tpu_custom_call.1} parent=1 // pred_check
      _
    $region35: #{tpu_custom_call.1} parent=1 // pred_check_branch
      %56 = sbr.rel (0) target = $region37
    $region36: #{tpu_custom_call.1} parent=1 // pred_region
      %58 = dma.done [#allocation7], 1536
    $region37: #{tpu_custom_call.1} parent=1 // pred_fallthru
      _
    %v59 = vld [vmem:[#allocation6] sm:$0xff]
    %v60 = vld [vmem:[#allocation6 + $0x8] sm:$0xff]
    %v61 = vld [vmem:[#allocation6 + $0x10] sm:$0xff]
    %v62 = vld [vmem:[#allocation6 + $0x18] sm:$0xff]
    %s63 = scalar_lea.vmem [#allocation6], 32
    %v64 = vld [vmem:[%s63] sm:$0xff]
    %v65 = vld [vmem:[%s63 + $0x8] sm:$0xff]
    %v66 = vld [vmem:[%s63 + $0x10] sm:$0xff]
    %v67 = vld [vmem:[%s63 + $0x18] sm:$0xff]
    %s68 = scalar_lea.vmem [#allocation6], 64
    %v69 = vld [vmem:[%s68] sm:$0xff]
    %v70 = vld [vmem:[%s68 + $0x8] sm:$0xff]
    %v71 = vld [vmem:[%s68 + $0x10] sm:$0xff]
    %v72 = vld [vmem:[%s68 + $0x18] sm:$0xff]
    %v73 = vld [vmem:[#allocation4] sm:$0xff]
    %v74 = vld [vmem:[#allocation4 + $0x8] sm:$0xff]
    %v75 = vld [vmem:[#allocation4 + $0x10] sm:$0xff]
    %v76 = vld [vmem:[#allocation4 + $0x18] sm:$0xff]
    %s77 = scalar_lea.vmem [#allocation4], 32
    %v78 = vld [vmem:[%s77] sm:$0xff]
    %v79 = vld [vmem:[%s77 + $0x8] sm:$0xff]
    %v80 = vld [vmem:[%s77 + $0x10] sm:$0xff]
    %v81 = vld [vmem:[%s77 + $0x18] sm:$0xff]
    %v82 = vld [vmem:[%s4 + $0x1] sm:$0x1]
    %v83 = vperm.slane %v82, 0
    %v84 = vld [vmem:[%s4 + $0x2] sm:$0x1]
    %v85 = vperm.slane %v84, 0
    %v86 = vld [vmem:[%s0] sm:$0xff]
    %v87 = vperm.slane %v86, 0
    %v88 = vlaneseq
    %v89 = vshrl.u32 %v88, 7
    %91 = vset.pattern.permute.xlu0 %v89
    %92 = vperm.xlu0 %91, %v87
    %v93 = vpop.permute.xlu0 %92
    %v94 = vperm.slane %v86, 1
    %v95 = vlaneseq
    %v96 = vshrl.u32 %v95, 7
    %98 = vset.pattern.permute.xlu0 %v96
    %99 = vperm.xlu0 %98, %v94
    %v100 = vpop.permute.xlu0 %99
    %v101 = vperm.slane %v86, 2
    %v102 = vlaneseq
    %v103 = vshrl.u32 %v102, 7
    %105 = vset.pattern.permute.xlu0 %v103
    %106 = vperm.xlu0 %105, %v101
    %v107 = vpop.permute.xlu0 %106
    %v108 = vperm.slane %v86, 3
    %v109 = vlaneseq
    %v110 = vshrl.u32 %v109, 7
    %112 = vset.pattern.permute.xlu0 %v110
    %113 = vperm.xlu0 %112, %v108
    %v114 = vpop.permute.xlu0 %113
    %v115 = vperm.slane %v86, 4
    %v116 = vlaneseq
    %v117 = vshrl.u32 %v116, 7
    %119 = vset.pattern.permute.xlu0 %v117
    %120 = vperm.xlu0 %119, %v115
    %v121 = vpop.permute.xlu0 %120
    %v122 = vperm.slane %v86, 5
    %v123 = vlaneseq
    %v124 = vshrl.u32 %v123, 7
    %126 = vset.pattern.permute.xlu0 %v124
    %127 = vperm.xlu0 %126, %v122
    %v128 = vpop.permute.xlu0 %127
    %v129 = vperm.slane %v86, 6
    %v130 = vlaneseq
    %v131 = vshrl.u32 %v130, 7
    %133 = vset.pattern.permute.xlu0 %v131
    %134 = vperm.xlu0 %133, %v129
    %v135 = vpop.permute.xlu0 %134
    %v136 = vperm.slane %v86, 7
    %v137 = vlaneseq
    %v138 = vshrl.u32 %v137, 7
    %140 = vset.pattern.permute.xlu0 %v138
    %141 = vperm.xlu0 %140, %v136
    %v142 = vpop.permute.xlu0 %141
    %v143 = vld [vmem:[%s1] sm:$0x1]
    %v145 = vperm.slane %v143, 0
    %v147 = vmul.f32 %v93, %v145
    %v148 = vmul.f32 %v100, %v145
    %v149 = vmul.f32 %v107, %v145
    %v150 = vmul.f32 %v114, %v145
    %v151 = vmul.f32 %v121, %v145
    %v152 = vmul.f32 %v128, %v145
    %v153 = vmul.f32 %v135, %v145
    %v154 = vmul.f32 %v142, %v145
    %v155 = vld [vmem:[%s4] sm:$0x1]
    %v156 = vperm.slane %v155, 0
    %v157 = vadd.f32 %v147, %v156
    %v158 = vadd.f32 %v148, %v156
    %v159 = vadd.f32 %v149, %v156
    %v160 = vadd.f32 %v150, %v156
    %v161 = vadd.f32 %v151, %v156
    %v162 = vadd.f32 %v152, %v156
    %v163 = vadd.f32 %v153, %v156
    %v164 = vadd.f32 %v154, %v156
    %vm165 = vcmask 261120
    %v167 = vsel %vm165, 0.0, 0
    %169 = vmatpush.msra.mxu0 0.0
    %170 = vmatpush.msra.mxu0 0.0
    %171 = vmatpush.msra.mxu0 0.0
    %172 = vmatpush.msra.mxu0 0.0
    %173 = vmatpush.msra.mxu0 0.0
    %174 = vmatpush.msra.mxu0 0.0
    %175 = vmatpush.msra.mxu0 0.0
    %176 = vmatpush.msra.mxu0 0.0
    %177 = vmatpush.msra.mxu0 0.0
    %178 = vmatpush.msra.mxu0 0.0
    %179 = vmatpush.msra.mxu0 0.0
    %180 = vmatpush.msra.mxu0 0.0
    %181 = vmatpush.msra.mxu0 %v62
    %182 = vmatpush.msra.mxu0 %v61
    %183 = vmatpush.msra.mxu0 %v60
    %184 = vmatpush.msra.mxu0 %v59
    %185 = vmatmul.f32.gmra.mxu0 %v167
    %v186 = vpop.f32.mrf.mxu0
    %v187 = vadd.f32 0.0, %v186
    %188 = vdwg.mxu0
    %v189 = vadd.f32 %v157, %v187
    %v190 = vxor.u32 %v189, 2147483648
    %v191 = vmul.f32 %v190, 1.442695
    %v192 = vpow.pop %v191
    %v193 = vadd.f32 %v192, 1.0
    %v194 = vrcp.pop %v193
    %v195 = vmul.f32 %v193, %v194
    %v196 = vsub.f32 1.0, %v195
    %v197 = vmul.f32 %v194, %v196
    %v198 = vadd.f32 %v194, %v197
    %vm199 = vweird.f32 %v193
    %vm200 = vweird.f32 %v194
    %vm201 = vmor %vm199, %vm200
    %v202 = vsel %vm201, %v194, %v198
    %v203 = vand.u32 2147483647, %v193
    %vm204 = vcmp.eq.f32.partialorder %v203, 8.507059e+37
    %v205 = vand.u32 %v193, 2147483648
    %v206 = vor.u32 1.1754944e-38, %v205
    %v207 = vsel %vm204, %v206, %v202
    %v208 = vmul.f32 1.0, %v207
    %v209 = vtanh.pop %v189
    %v210 = vmul.f32 %v208, 0.0
    %212 = vrot.lane.b32.xlu0 %v209, 64
    %v213 = vpop.permute.xlu0 %212
    %v215 = vmul.f32 %v208, %v213
    %217 = vrot.lane.b32.xlu0 %v215, 32
    %v218 = vpop.permute.xlu0 %217
    %v220 = vadd.f32 %v210, %v218
    %v221 = vtanh.pop %v220
    %223 = vrot.lane.b32.xlu0 %v221, 64
    %v224 = vpop.permute.xlu0 %223
    %v226 = vmul.f32 %v208, %v224
    %228 = vrot.lane.b32.xlu0 %v226, 32
    %v229 = vpop.permute.xlu0 %228
    %v230 = vsel %vm165, %v229, 0
    %232 = vmatpush.msra.mxu0 0.0
    %233 = vmatpush.msra.mxu0 0.0
    %234 = vmatpush.msra.mxu0 0.0
    %235 = vmatpush.msra.mxu0 0.0
    %236 = vmatpush.msra.mxu0 0.0
    %237 = vmatpush.msra.mxu0 0.0
    %238 = vmatpush.msra.mxu0 0.0
    %239 = vmatpush.msra.mxu0 0.0
    %240 = vmatpush.msra.mxu0 0.0
    %241 = vmatpush.msra.mxu0 0.0
    %242 = vmatpush.msra.mxu0 0.0
    %243 = vmatpush.msra.mxu0 0.0
    %244 = vmatpush.msra.mxu0 %v62
    %245 = vmatpush.msra.mxu0 %v61
    %246 = vmatpush.msra.mxu0 %v60
    %247 = vmatpush.msra.mxu0 %v59
    %248 = vmatmul.f32.gmra.mxu0 %v230
    %v249 = vpop.f32.mrf.mxu0
    %v250 = vadd.f32 0.0, %v249
    %251 = vdwg.mxu0
    %v252 = vadd.f32 %v158, %v250
    %v253 = vxor.u32 %v252, 2147483648
    %v254 = vmul.f32 %v253, 1.442695
    %v255 = vpow.pop %v254
    %v256 = vadd.f32 %v255, 1.0
    %v257 = vrcp.pop %v256
    %v258 = vmul.f32 %v256, %v257
    %v259 = vsub.f32 1.0, %v258
    %v260 = vmul.f32 %v257, %v259
    %v261 = vadd.f32 %v257, %v260
    %vm262 = vweird.f32 %v256
    %vm263 = vweird.f32 %v257
    %vm264 = vmor %vm262, %vm263
    %v265 = vsel %vm264, %v257, %v261
    %v266 = vand.u32 2147483647, %v256
    %vm267 = vcmp.eq.f32.partialorder %v266, 8.507059e+37
    %v268 = vand.u32 %v256, 2147483648
    %v269 = vor.u32 1.1754944e-38, %v268
    %v270 = vsel %vm267, %v269, %v265
    %v271 = vmul.f32 1.0, %v270
    %v272 = vtanh.pop %v252
    %v273 = vmul.f32 %v271, %v220
    %275 = vrot.lane.b32.xlu0 %v272, 64
    %v276 = vpop.permute.xlu0 %275
    %v278 = vmul.f32 %v271, %v276
    %280 = vrot.lane.b32.xlu0 %v278, 32
    %v281 = vpop.permute.xlu0 %280
    %v283 = vadd.f32 %v273, %v281
    %v284 = vtanh.pop %v283
    %286 = vrot.lane.b32.xlu0 %v284, 64
    %v287 = vpop.permute.xlu0 %286
    %v289 = vmul.f32 %v271, %v287
    %290 = vmatpush.msra.mxu0 0.0
    %291 = vmatpush.msra.mxu0 0.0
    %292 = vmatpush.msra.mxu0 0.0
    %293 = vmatpush.msra.mxu0 0.0
    %294 = vmatpush.msra.mxu0 0.0
    %295 = vmatpush.msra.mxu0 0.0
    %296 = vmatpush.msra.mxu0 0.0
    %297 = vmatpush.msra.mxu0 0.0
    %298 = vmatpush.msra.mxu0 0.0
    %299 = vmatpush.msra.mxu0 0.0
    %300 = vmatpush.msra.mxu0 0.0
    %301 = vmatpush.msra.mxu0 0.0
    %302 = vmatpush.msra.mxu0 %v67
    %303 = vmatpush.msra.mxu0 %v66
    %304 = vmatpush.msra.mxu0 %v65
    %305 = vmatpush.msra.mxu0 %v64
    %306 = vmatmul.f32.gmra.mxu0 %v167
    %v307 = vpop.f32.mrf.mxu0
    %v308 = vadd.f32 0.0, %v307
    %309 = vdwg.mxu0
    %310 = vmatpush.msra.mxu0 0.0
    %311 = vmatpush.msra.mxu0 0.0
    %312 = vmatpush.msra.mxu0 0.0
    %313 = vmatpush.msra.mxu0 0.0
    %314 = vmatpush.msra.mxu0 0.0
    %315 = vmatpush.msra.mxu0 0.0
    %316 = vmatpush.msra.mxu0 0.0
    %317 = vmatpush.msra.mxu0 0.0
    %318 = vmatpush.msra.mxu0 0.0
    %319 = vmatpush.msra.mxu0 0.0
    %320 = vmatpush.msra.mxu0 0.0
    %321 = vmatpush.msra.mxu0 0.0
    %322 = vmatpush.msra.mxu0 %v76
    %323 = vmatpush.msra.mxu0 %v75
    %324 = vmatpush.msra.mxu0 %v74
    %325 = vmatpush.msra.mxu0 %v73
    %326 = vmatmul.f32.gmra.mxu0 %v230
    %v327 = vpop.f32.mrf.mxu0
    %v328 = vadd.f32 %v308, %v327
    %329 = vdwg.mxu0
    %v330 = vadd.f32 %v328, %v83
    %v331 = vxor.u32 %v330, 2147483648
    %v332 = vmul.f32 %v331, 1.442695
    %v333 = vpow.pop %v332
    %v334 = vadd.f32 %v333, 1.0
    %v335 = vrcp.pop %v334
    %v336 = vmul.f32 %v334, %v335
    %v337 = vsub.f32 1.0, %v336
    %v338 = vmul.f32 %v335, %v337
    %v339 = vadd.f32 %v335, %v338
    %vm340 = vweird.f32 %v334
    %vm341 = vweird.f32 %v335
    %vm342 = vmor %vm340, %vm341
    %v343 = vsel %vm342, %v335, %v339
    %v344 = vand.u32 2147483647, %v334
    %vm345 = vcmp.eq.f32.partialorder %v344, 8.507059e+37
    %v346 = vand.u32 %v334, 2147483648
    %v347 = vor.u32 1.1754944e-38, %v346
    %v348 = vsel %vm345, %v347, %v343
    %v349 = vmul.f32 1.0, %v348
    %v350 = vtanh.pop %v330
    %v351 = vmul.f32 %v349, 0.0
    %353 = vrot.lane.b32.xlu0 %v350, 64
    %v354 = vpop.permute.xlu0 %353
    %v356 = vmul.f32 %v349, %v354
    %358 = vrot.lane.b32.xlu0 %v356, 32
    %v359 = vpop.permute.xlu0 %358
    %v361 = vadd.f32 %v351, %v359
    %v362 = vtanh.pop %v361
    %364 = vrot.lane.b32.xlu0 %v362, 64
    %v365 = vpop.permute.xlu0 %364
    %v367 = vmul.f32 %v349, %v365
    %369 = vrot.lane.b32.xlu0 %v289, 32
    %v370 = vpop.permute.xlu0 %369
    %v371 = vsel %vm165, %v370, 0
    %373 = vmatpush.msra.mxu0 0.0
    %374 = vmatpush.msra.mxu0 0.0
    %375 = vmatpush.msra.mxu0 0.0
    %376 = vmatpush.msra.mxu0 0.0
    %377 = vmatpush.msra.mxu0 0.0
    %378 = vmatpush.msra.mxu0 0.0
    %379 = vmatpush.msra.mxu0 0.0
    %380 = vmatpush.msra.mxu0 0.0
    %381 = vmatpush.msra.mxu0 0.0
    %382 = vmatpush.msra.mxu0 0.0
    %383 = vmatpush.msra.mxu0 0.0
    %384 = vmatpush.msra.mxu0 0.0
    %385 = vmatpush.msra.mxu0 %v62
    %386 = vmatpush.msra.mxu0 %v61
    %387 = vmatpush.msra.mxu0 %v60
    %388 = vmatpush.msra.mxu0 %v59
    %389 = vmatmul.f32.gmra.mxu0 %v371
    %v390 = vpop.f32.mrf.mxu0
    %v391 = vadd.f32 0.0, %v390
    %392 = vdwg.mxu0
    %v393 = vadd.f32 %v159, %v391
    %v394 = vxor.u32 %v393, 2147483648
    %v395 = vmul.f32 %v394, 1.442695
    %v396 = vpow.pop %v395
    %v397 = vadd.f32 %v396, 1.0
    %v398 = vrcp.pop %v397
    %v399 = vmul.f32 %v397, %v398
    %v400 = vsub.f32 1.0, %v399
    %v401 = vmul.f32 %v398, %v400
    %v402 = vadd.f32 %v398, %v401
    %vm403 = vweird.f32 %v397
    %vm404 = vweird.f32 %v398
    %vm405 = vmor %vm403, %vm404
    %v406 = vsel %vm405, %v398, %v402
    %v407 = vand.u32 2147483647, %v397
    %vm408 = vcmp.eq.f32.partialorder %v407, 8.507059e+37
    %v409 = vand.u32 %v397, 2147483648
    %v410 = vor.u32 1.1754944e-38, %v409
    %v411 = vsel %vm408, %v410, %v406
    %v412 = vmul.f32 1.0, %v411
    %v413 = vtanh.pop %v393
    %v414 = vmul.f32 %v412, %v283
    %416 = vrot.lane.b32.xlu0 %v413, 64
    %v417 = vpop.permute.xlu0 %416
    %v419 = vmul.f32 %v412, %v417
    %421 = vrot.lane.b32.xlu0 %v419, 32
    %v422 = vpop.permute.xlu0 %421
    %v424 = vadd.f32 %v414, %v422
    %v425 = vtanh.pop %v424
    %427 = vrot.lane.b32.xlu0 %v425, 64
    %v428 = vpop.permute.xlu0 %427
    %v430 = vmul.f32 %v412, %v428
    %432 = vrot.lane.b32.xlu0 %v367, 32
    %v433 = vpop.permute.xlu0 %432
    %v434 = vsel %vm165, %v433, 0
    %436 = vmatpush.msra.mxu0 0.0
    %437 = vmatpush.msra.mxu0 0.0
    %438 = vmatpush.msra.mxu0 0.0
    %439 = vmatpush.msra.mxu0 0.0
    %440 = vmatpush.msra.mxu0 0.0
    %441 = vmatpush.msra.mxu0 0.0
    %442 = vmatpush.msra.mxu0 0.0
    %443 = vmatpush.msra.mxu0 0.0
    %444 = vmatpush.msra.mxu0 0.0
    %445 = vmatpush.msra.mxu0 0.0
    %446 = vmatpush.msra.mxu0 0.0
    %447 = vmatpush.msra.mxu0 0.0
    %448 = vmatpush.msra.mxu0 %v67
    %449 = vmatpush.msra.mxu0 %v66
    %450 = vmatpush.msra.mxu0 %v65
    %451 = vmatpush.msra.mxu0 %v64
    %452 = vmatmul.f32.gmra.mxu0 %v434
    %v453 = vpop.f32.mrf.mxu0
    %v454 = vadd.f32 0.0, %v453
    %455 = vdwg.mxu0
    %456 = vmatpush.msra.mxu0 0.0
    %457 = vmatpush.msra.mxu0 0.0
    %458 = vmatpush.msra.mxu0 0.0
    %459 = vmatpush.msra.mxu0 0.0
    %460 = vmatpush.msra.mxu0 0.0
    %461 = vmatpush.msra.mxu0 0.0
    %462 = vmatpush.msra.mxu0 0.0
    %463 = vmatpush.msra.mxu0 0.0
    %464 = vmatpush.msra.mxu0 0.0
    %465 = vmatpush.msra.mxu0 0.0
    %466 = vmatpush.msra.mxu0 0.0
    %467 = vmatpush.msra.mxu0 0.0
    %468 = vmatpush.msra.mxu0 %v76
    %469 = vmatpush.msra.mxu0 %v75
    %470 = vmatpush.msra.mxu0 %v74
    %471 = vmatpush.msra.mxu0 %v73
    %472 = vmatmul.f32.gmra.mxu0 %v371
    %v473 = vpop.f32.mrf.mxu0
    %v474 = vadd.f32 %v454, %v473
    %475 = vdwg.mxu0
    %v476 = vadd.f32 %v474, %v83
    %v477 = vxor.u32 %v476, 2147483648
    %v478 = vmul.f32 %v477, 1.442695
    %v479 = vpow.pop %v478
    %v480 = vadd.f32 %v479, 1.0
    %v481 = vrcp.pop %v480
    %v482 = vmul.f32 %v480, %v481
    %v483 = vsub.f32 1.0, %v482
    %v484 = vmul.f32 %v481, %v483
    %v485 = vadd.f32 %v481, %v484
    %vm486 = vweird.f32 %v480
    %vm487 = vweird.f32 %v481
    %vm488 = vmor %vm486, %vm487
    %v489 = vsel %vm488, %v481, %v485
    %v490 = vand.u32 2147483647, %v480
    %vm491 = vcmp.eq.f32.partialorder %v490, 8.507059e+37
    %v492 = vand.u32 %v480, 2147483648
    %v493 = vor.u32 1.1754944e-38, %v492
    %v494 = vsel %vm491, %v493, %v489
    %v495 = vmul.f32 1.0, %v494
    %v496 = vtanh.pop %v476
    %v497 = vmul.f32 %v495, %v361
    %499 = vrot.lane.b32.xlu0 %v496, 64
    %v500 = vpop.permute.xlu0 %499
    %v502 = vmul.f32 %v495, %v500
    %504 = vrot.lane.b32.xlu0 %v502, 32
    %v505 = vpop.permute.xlu0 %504
    %v507 = vadd.f32 %v497, %v505
    %v508 = vtanh.pop %v507
    %510 = vrot.lane.b32.xlu0 %v508, 64
    %v511 = vpop.permute.xlu0 %510
    %v513 = vmul.f32 %v495, %v511
    %514 = vmatpush.msra.mxu0 0.0
    %515 = vmatpush.msra.mxu0 0.0
    %516 = vmatpush.msra.mxu0 0.0
    %517 = vmatpush.msra.mxu0 0.0
    %518 = vmatpush.msra.mxu0 0.0
    %519 = vmatpush.msra.mxu0 0.0
    %520 = vmatpush.msra.mxu0 0.0
    %521 = vmatpush.msra.mxu0 0.0
    %522 = vmatpush.msra.mxu0 0.0
    %523 = vmatpush.msra.mxu0 0.0
    %524 = vmatpush.msra.mxu0 0.0
    %525 = vmatpush.msra.mxu0 0.0
    %526 = vmatpush.msra.mxu0 %v72
    %527 = vmatpush.msra.mxu0 %v71
    %528 = vmatpush.msra.mxu0 %v70
    %529 = vmatpush.msra.mxu0 %v69
    %530 = vmatmul.f32.gmra.mxu0 %v167
    %v531 = vpop.f32.mrf.mxu0
    %v532 = vadd.f32 0.0, %v531
    %533 = vdwg.mxu0
    %534 = vmatpush.msra.mxu0 0.0
    %535 = vmatpush.msra.mxu0 0.0
    %536 = vmatpush.msra.mxu0 0.0
    %537 = vmatpush.msra.mxu0 0.0
    %538 = vmatpush.msra.mxu0 0.0
    %539 = vmatpush.msra.mxu0 0.0
    %540 = vmatpush.msra.mxu0 0.0
    %541 = vmatpush.msra.mxu0 0.0
    %542 = vmatpush.msra.mxu0 0.0
    %543 = vmatpush.msra.mxu0 0.0
    %544 = vmatpush.msra.mxu0 0.0
    %545 = vmatpush.msra.mxu0 0.0
    %546 = vmatpush.msra.mxu0 %v81
    %547 = vmatpush.msra.mxu0 %v80
    %548 = vmatpush.msra.mxu0 %v79
    %549 = vmatpush.msra.mxu0 %v78
    %550 = vmatmul.f32.gmra.mxu0 %v434
    %v551 = vpop.f32.mrf.mxu0
    %v552 = vadd.f32 %v532, %v551
    %553 = vdwg.mxu0
    %v554 = vadd.f32 %v552, %v85
    %v555 = vxor.u32 %v554, 2147483648
    %v556 = vmul.f32 %v555, 1.442695
    %v557 = vpow.pop %v556
    %v558 = vadd.f32 %v557, 1.0
    %v559 = vrcp.pop %v558
    %v560 = vmul.f32 %v558, %v559
    %v561 = vsub.f32 1.0, %v560
    %v562 = vmul.f32 %v559, %v561
    %v563 = vadd.f32 %v559, %v562
    %vm564 = vweird.f32 %v558
    %vm565 = vweird.f32 %v559
    %vm566 = vmor %vm564, %vm565
    %v567 = vsel %vm566, %v559, %v563
    %v568 = vand.u32 2147483647, %v558
    %vm569 = vcmp.eq.f32.partialorder %v568, 8.507059e+37
    %v570 = vand.u32 %v558, 2147483648
    %v571 = vor.u32 1.1754944e-38, %v570
    %v572 = vsel %vm569, %v571, %v567
    %v573 = vmul.f32 1.0, %v572
    %v574 = vtanh.pop %v554
    %v575 = vmul.f32 %v573, 0.0
    %577 = vrot.lane.b32.xlu0 %v574, 64
    %v578 = vpop.permute.xlu0 %577
    %v580 = vmul.f32 %v573, %v578
    %582 = vrot.lane.b32.xlu0 %v580, 32
    %v583 = vpop.permute.xlu0 %582
    %v585 = vadd.f32 %v575, %v583
    %v586 = vtanh.pop %v585
    %588 = vrot.lane.b32.xlu0 %v586, 64
    %v589 = vpop.permute.xlu0 %588
    %v591 = vmul.f32 %v573, %v589
    %593 = vrot.lane.b32.xlu0 %v591, 32
    %v594 = vpop.permute.xlu0 %593
    %vm596 = vcmask 254976
    %597 = vst.msk [vmem:[#allocation2] sm:$0x3] %vm596, %v594
    %599 = vrot.lane.b32.xlu0 %v430, 32
    %v600 = vpop.permute.xlu0 %599
    %v601 = vsel %vm165, %v600, 0
    %603 = vmatpush.msra.mxu0 0.0
    %604 = vmatpush.msra.mxu0 0.0
    %605 = vmatpush.msra.mxu0 0.0
    %606 = vmatpush.msra.mxu0 0.0
    %607 = vmatpush.msra.mxu0 0.0
    %608 = vmatpush.msra.mxu0 0.0
    %609 = vmatpush.msra.mxu0 0.0
    %610 = vmatpush.msra.mxu0 0.0
    %611 = vmatpush.msra.mxu0 0.0
    %612 = vmatpush.msra.mxu0 0.0
    %613 = vmatpush.msra.mxu0 0.0
    %614 = vmatpush.msra.mxu0 0.0
    %615 = vmatpush.msra.mxu0 %v62
    %616 = vmatpush.msra.mxu0 %v61
    %617 = vmatpush.msra.mxu0 %v60
    %618 = vmatpush.msra.mxu0 %v59
    %619 = vmatmul.f32.gmra.mxu0 %v601
    %v620 = vpop.f32.mrf.mxu0
    %v621 = vadd.f32 0.0, %v620
    %622 = vdwg.mxu0
    %v623 = vadd.f32 %v160, %v621
    %v624 = vxor.u32 %v623, 2147483648
    %v625 = vmul.f32 %v624, 1.442695
    %v626 = vpow.pop %v625
    %v627 = vadd.f32 %v626, 1.0
    %v628 = vrcp.pop %v627
    %v629 = vmul.f32 %v627, %v628
    %v630 = vsub.f32 1.0, %v629
    %v631 = vmul.f32 %v628, %v630
    %v632 = vadd.f32 %v628, %v631
    %vm633 = vweird.f32 %v627
    %vm634 = vweird.f32 %v628
    %vm635 = vmor %vm633, %vm634
    %v636 = vsel %vm635, %v628, %v632
    %v637 = vand.u32 2147483647, %v627
    %vm638 = vcmp.eq.f32.partialorder %v637, 8.507059e+37
    %v639 = vand.u32 %v627, 2147483648
    %v640 = vor.u32 1.1754944e-38, %v639
    %v641 = vsel %vm638, %v640, %v636
    %v642 = vmul.f32 1.0, %v641
    %v643 = vtanh.pop %v623
    %v644 = vmul.f32 %v642, %v424
    %646 = vrot.lane.b32.xlu0 %v643, 64
    %v647 = vpop.permute.xlu0 %646
    %v649 = vmul.f32 %v642, %v647
    %651 = vrot.lane.b32.xlu0 %v649, 32
    %v652 = vpop.permute.xlu0 %651
    %v654 = vadd.f32 %v644, %v652
    %v655 = vtanh.pop %v654
    %657 = vrot.lane.b32.xlu0 %v655, 64
    %v658 = vpop.permute.xlu0 %657
    %v660 = vmul.f32 %v642, %v658
    %662 = vrot.lane.b32.xlu0 %v513, 32
    %v663 = vpop.permute.xlu0 %662
    %v664 = vsel %vm165, %v663, 0
    %666 = vmatpush.msra.mxu0 0.0
    %667 = vmatpush.msra.mxu0 0.0
    %668 = vmatpush.msra.mxu0 0.0
    %669 = vmatpush.msra.mxu0 0.0
    %670 = vmatpush.msra.mxu0 0.0
    %671 = vmatpush.msra.mxu0 0.0
    %672 = vmatpush.msra.mxu0 0.0
    %673 = vmatpush.msra.mxu0 0.0
    %674 = vmatpush.msra.mxu0 0.0
    %675 = vmatpush.msra.mxu0 0.0
    %676 = vmatpush.msra.mxu0 0.0
    %677 = vmatpush.msra.mxu0 0.0
    %678 = vmatpush.msra.mxu0 %v67
    %679 = vmatpush.msra.mxu0 %v66
    %680 = vmatpush.msra.mxu0 %v65
    %681 = vmatpush.msra.mxu0 %v64
    %682 = vmatmul.f32.gmra.mxu0 %v664
    %v683 = vpop.f32.mrf.mxu0
    %v684 = vadd.f32 0.0, %v683
    %685 = vdwg.mxu0
    %686 = vmatpush.msra.mxu0 0.0
    %687 = vmatpush.msra.mxu0 0.0
    %688 = vmatpush.msra.mxu0 0.0
    %689 = vmatpush.msra.mxu0 0.0
    %690 = vmatpush.msra.mxu0 0.0
    %691 = vmatpush.msra.mxu0 0.0
    %692 = vmatpush.msra.mxu0 0.0
    %693 = vmatpush.msra.mxu0 0.0
    %694 = vmatpush.msra.mxu0 0.0
    %695 = vmatpush.msra.mxu0 0.0
    %696 = vmatpush.msra.mxu0 0.0
    %697 = vmatpush.msra.mxu0 0.0
    %698 = vmatpush.msra.mxu0 %v76
    %699 = vmatpush.msra.mxu0 %v75
    %700 = vmatpush.msra.mxu0 %v74
    %701 = vmatpush.msra.mxu0 %v73
    %702 = vmatmul.f32.gmra.mxu0 %v601
    %v703 = vpop.f32.mrf.mxu0
    %v704 = vadd.f32 %v684, %v703
    %705 = vdwg.mxu0
    %v706 = vadd.f32 %v704, %v83
    %v707 = vxor.u32 %v706, 2147483648
    %v708 = vmul.f32 %v707, 1.442695
    %v709 = vpow.pop %v708
    %v710 = vadd.f32 %v709, 1.0
    %v711 = vrcp.pop %v710
    %v712 = vmul.f32 %v710, %v711
    %v713 = vsub.f32 1.0, %v712
    %v714 = vmul.f32 %v711, %v713
    %v715 = vadd.f32 %v711, %v714
    %vm716 = vweird.f32 %v710
    %vm717 = vweird.f32 %v711
    %vm718 = vmor %vm716, %vm717
    %v719 = vsel %vm718, %v711, %v715
    %v720 = vand.u32 2147483647, %v710
    %vm721 = vcmp.eq.f32.partialorder %v720, 8.507059e+37
    %v722 = vand.u32 %v710, 2147483648
    %v723 = vor.u32 1.1754944e-38, %v722
    %v724 = vsel %vm721, %v723, %v719
    %v725 = vmul.f32 1.0, %v724
    %v726 = vtanh.pop %v706
    %v727 = vmul.f32 %v725, %v507
    %729 = vrot.lane.b32.xlu0 %v726, 64
    %v730 = vpop.permute.xlu0 %729
    %v732 = vmul.f32 %v725, %v730
    %734 = vrot.lane.b32.xlu0 %v732, 32
    %v735 = vpop.permute.xlu0 %734
    %v737 = vadd.f32 %v727, %v735
    %v738 = vtanh.pop %v737
    %740 = vrot.lane.b32.xlu0 %v738, 64
    %v741 = vpop.permute.xlu0 %740
    %v743 = vmul.f32 %v725, %v741
    %v744 = vsel %vm165, %v594, 0
    %746 = vmatpush.msra.mxu0 0.0
    %747 = vmatpush.msra.mxu0 0.0
    %748 = vmatpush.msra.mxu0 0.0
    %749 = vmatpush.msra.mxu0 0.0
    %750 = vmatpush.msra.mxu0 0.0
    %751 = vmatpush.msra.mxu0 0.0
    %752 = vmatpush.msra.mxu0 0.0
    %753 = vmatpush.msra.mxu0 0.0
    %754 = vmatpush.msra.mxu0 0.0
    %755 = vmatpush.msra.mxu0 0.0
    %756 = vmatpush.msra.mxu0 0.0
    %757 = vmatpush.msra.mxu0 0.0
    %758 = vmatpush.msra.mxu0 %v72
    %759 = vmatpush.msra.mxu0 %v71
    %760 = vmatpush.msra.mxu0 %v70
    %761 = vmatpush.msra.mxu0 %v69
    %762 = vmatmul.f32.gmra.mxu0 %v744
    %v763 = vpop.f32.mrf.mxu0
    %v764 = vadd.f32 0.0, %v763
    %765 = vdwg.mxu0
    %766 = vmatpush.msra.mxu0 0.0
    %767 = vmatpush.msra.mxu0 0.0
    %768 = vmatpush.msra.mxu0 0.0
    %769 = vmatpush.msra.mxu0 0.0
    %770 = vmatpush.msra.mxu0 0.0
    %771 = vmatpush.msra.mxu0 0.0
    %772 = vmatpush.msra.mxu0 0.0
    %773 = vmatpush.msra.mxu0 0.0
    %774 = vmatpush.msra.mxu0 0.0
    %775 = vmatpush.msra.mxu0 0.0
    %776 = vmatpush.msra.mxu0 0.0
    %777 = vmatpush.msra.mxu0 0.0
    %778 = vmatpush.msra.mxu0 %v81
    %779 = vmatpush.msra.mxu0 %v80
    %780 = vmatpush.msra.mxu0 %v79
    %781 = vmatpush.msra.mxu0 %v78
    %782 = vmatmul.f32.gmra.mxu0 %v664
    %v783 = vpop.f32.mrf.mxu0
    %v784 = vadd.f32 %v764, %v783
    %785 = vdwg.mxu0
    %v786 = vadd.f32 %v784, %v85
    %v787 = vxor.u32 %v786, 2147483648
    %v788 = vmul.f32 %v787, 1.442695
    %v789 = vpow.pop %v788
    %v790 = vadd.f32 %v789, 1.0
    %v791 = vrcp.pop %v790
    %v792 = vmul.f32 %v790, %v791
    %v793 = vsub.f32 1.0, %v792
    %v794 = vmul.f32 %v791, %v793
    %v795 = vadd.f32 %v791, %v794
    %vm796 = vweird.f32 %v790
    %vm797 = vweird.f32 %v791
    %vm798 = vmor %vm796, %vm797
    %v799 = vsel %vm798, %v791, %v795
    %v800 = vand.u32 2147483647, %v790
    %vm801 = vcmp.eq.f32.partialorder %v800, 8.507059e+37
    %v802 = vand.u32 %v790, 2147483648
    %v803 = vor.u32 1.1754944e-38, %v802
    %v804 = vsel %vm801, %v803, %v799
    %v805 = vmul.f32 1.0, %v804
    %v806 = vtanh.pop %v786
    %v807 = vmul.f32 %v805, %v585
    %809 = vrot.lane.b32.xlu0 %v806, 64
    %v810 = vpop.permute.xlu0 %809
    %v812 = vmul.f32 %v805, %v810
    %814 = vrot.lane.b32.xlu0 %v812, 32
    %v815 = vpop.permute.xlu0 %814
    %v817 = vadd.f32 %v807, %v815
    %v818 = vtanh.pop %v817
    %820 = vrot.lane.b32.xlu0 %v818, 64
    %v821 = vpop.permute.xlu0 %820
    %v823 = vmul.f32 %v805, %v821
    %825 = vrot.lane.b32.xlu0 %v823, 32
    %v826 = vpop.permute.xlu0 %825
    %s828 = scalar_lea.vmem [#allocation2], 2
    %829 = vst.msk [vmem:[%s828] sm:$0x3] %vm596, %v826
    %831 = vrot.lane.b32.xlu0 %v660, 32
    %v832 = vpop.permute.xlu0 %831
    %v833 = vsel %vm165, %v832, 0
    %835 = vmatpush.msra.mxu0 0.0
    %836 = vmatpush.msra.mxu0 0.0
    %837 = vmatpush.msra.mxu0 0.0
    %838 = vmatpush.msra.mxu0 0.0
    %839 = vmatpush.msra.mxu0 0.0
    %840 = vmatpush.msra.mxu0 0.0
    %841 = vmatpush.msra.mxu0 0.0
    %842 = vmatpush.msra.mxu0 0.0
    %843 = vmatpush.msra.mxu0 0.0
    %844 = vmatpush.msra.mxu0 0.0
    %845 = vmatpush.msra.mxu0 0.0
    %846 = vmatpush.msra.mxu0 0.0
    %847 = vmatpush.msra.mxu0 %v62
    %848 = vmatpush.msra.mxu0 %v61
    %849 = vmatpush.msra.mxu0 %v60
    %850 = vmatpush.msra.mxu0 %v59
    %851 = vmatmul.f32.gmra.mxu0 %v833
    %v852 = vpop.f32.mrf.mxu0
    %v853 = vadd.f32 0.0, %v852
    %854 = vdwg.mxu0
    %v855 = vadd.f32 %v161, %v853
    %v856 = vxor.u32 %v855, 2147483648
    %v857 = vmul.f32 %v856, 1.442695
    %v858 = vpow.pop %v857
    %v859 = vadd.f32 %v858, 1.0
    %v860 = vrcp.pop %v859
    %v861 = vmul.f32 %v859, %v860
    %v862 = vsub.f32 1.0, %v861
    %v863 = vmul.f32 %v860, %v862
    %v864 = vadd.f32 %v860, %v863
    %vm865 = vweird.f32 %v859
    %vm866 = vweird.f32 %v860
    %vm867 = vmor %vm865, %vm866
    %v868 = vsel %vm867, %v860, %v864
    %v869 = vand.u32 2147483647, %v859
    %vm870 = vcmp.eq.f32.partialorder %v869, 8.507059e+37
    %v871 = vand.u32 %v859, 2147483648
    %v872 = vor.u32 1.1754944e-38, %v871
    %v873 = vsel %vm870, %v872, %v868
    %v874 = vmul.f32 1.0, %v873
    %v875 = vtanh.pop %v855
    %v876 = vmul.f32 %v874, %v654
    %878 = vrot.lane.b32.xlu0 %v875, 64
    %v879 = vpop.permute.xlu0 %878
    %v881 = vmul.f32 %v874, %v879
    %883 = vrot.lane.b32.xlu0 %v881, 32
    %v884 = vpop.permute.xlu0 %883
    %v886 = vadd.f32 %v876, %v884
    %v887 = vtanh.pop %v886
    %889 = vrot.lane.b32.xlu0 %v887, 64
    %v890 = vpop.permute.xlu0 %889
    %v892 = vmul.f32 %v874, %v890
    %894 = vrot.lane.b32.xlu0 %v743, 32
    %v895 = vpop.permute.xlu0 %894
    %v896 = vsel %vm165, %v895, 0
    %898 = vmatpush.msra.mxu0 0.0
    %899 = vmatpush.msra.mxu0 0.0
    %900 = vmatpush.msra.mxu0 0.0
    %901 = vmatpush.msra.mxu0 0.0
    %902 = vmatpush.msra.mxu0 0.0
    %903 = vmatpush.msra.mxu0 0.0
    %904 = vmatpush.msra.mxu0 0.0
    %905 = vmatpush.msra.mxu0 0.0
    %906 = vmatpush.msra.mxu0 0.0
    %907 = vmatpush.msra.mxu0 0.0
    %908 = vmatpush.msra.mxu0 0.0
    %909 = vmatpush.msra.mxu0 0.0
    %910 = vmatpush.msra.mxu0 %v67
    %911 = vmatpush.msra.mxu0 %v66
    %912 = vmatpush.msra.mxu0 %v65
    %913 = vmatpush.msra.mxu0 %v64
    %914 = vmatmul.f32.gmra.mxu0 %v896
    %v915 = vpop.f32.mrf.mxu0
    %v916 = vadd.f32 0.0, %v915
    %917 = vdwg.mxu0
    %918 = vmatpush.msra.mxu0 0.0
    %919 = vmatpush.msra.mxu0 0.0
    %920 = vmatpush.msra.mxu0 0.0
    %921 = vmatpush.msra.mxu0 0.0
    %922 = vmatpush.msra.mxu0 0.0
    %923 = vmatpush.msra.mxu0 0.0
    %924 = vmatpush.msra.mxu0 0.0
    %925 = vmatpush.msra.mxu0 0.0
    %926 = vmatpush.msra.mxu0 0.0
    %927 = vmatpush.msra.mxu0 0.0
    %928 = vmatpush.msra.mxu0 0.0
    %929 = vmatpush.msra.mxu0 0.0
    %930 = vmatpush.msra.mxu0 %v76
    %931 = vmatpush.msra.mxu0 %v75
    %932 = vmatpush.msra.mxu0 %v74
    %933 = vmatpush.msra.mxu0 %v73
    %934 = vmatmul.f32.gmra.mxu0 %v833
    %v935 = vpop.f32.mrf.mxu0
    %v936 = vadd.f32 %v916, %v935
    %937 = vdwg.mxu0
    %v938 = vadd.f32 %v936, %v83
    %v939 = vxor.u32 %v938, 2147483648
    %v940 = vmul.f32 %v939, 1.442695
    %v941 = vpow.pop %v940
    %v942 = vadd.f32 %v941, 1.0
    %v943 = vrcp.pop %v942
    %v944 = vmul.f32 %v942, %v943
    %v945 = vsub.f32 1.0, %v944
    %v946 = vmul.f32 %v943, %v945
    %v947 = vadd.f32 %v943, %v946
    %vm948 = vweird.f32 %v942
    %vm949 = vweird.f32 %v943
    %vm950 = vmor %vm948, %vm949
    %v951 = vsel %vm950, %v943, %v947
    %v952 = vand.u32 2147483647, %v942
    %vm953 = vcmp.eq.f32.partialorder %v952, 8.507059e+37
    %v954 = vand.u32 %v942, 2147483648
    %v955 = vor.u32 1.1754944e-38, %v954
    %v956 = vsel %vm953, %v955, %v951
    %v957 = vmul.f32 1.0, %v956
    %v958 = vtanh.pop %v938
    %v959 = vmul.f32 %v957, %v737
    %961 = vrot.lane.b32.xlu0 %v958, 64
    %v962 = vpop.permute.xlu0 %961
    %v964 = vmul.f32 %v957, %v962
    %966 = vrot.lane.b32.xlu0 %v964, 32
    %v967 = vpop.permute.xlu0 %966
    %v969 = vadd.f32 %v959, %v967
    %v970 = vtanh.pop %v969
    %972 = vrot.lane.b32.xlu0 %v970, 64
    %v973 = vpop.permute.xlu0 %972
    %v975 = vmul.f32 %v957, %v973
    %v976 = vsel %vm165, %v826, 0
    %978 = vmatpush.msra.mxu0 0.0
    %979 = vmatpush.msra.mxu0 0.0
    %980 = vmatpush.msra.mxu0 0.0
    %981 = vmatpush.msra.mxu0 0.0
    %982 = vmatpush.msra.mxu0 0.0
    %983 = vmatpush.msra.mxu0 0.0
    %984 = vmatpush.msra.mxu0 0.0
    %985 = vmatpush.msra.mxu0 0.0
    %986 = vmatpush.msra.mxu0 0.0
    %987 = vmatpush.msra.mxu0 0.0
    %988 = vmatpush.msra.mxu0 0.0
    %989 = vmatpush.msra.mxu0 0.0
    %990 = vmatpush.msra.mxu0 %v72
    %991 = vmatpush.msra.mxu0 %v71
    %992 = vmatpush.msra.mxu0 %v70
    %993 = vmatpush.msra.mxu0 %v69
    %994 = vmatmul.f32.gmra.mxu0 %v976
    %v995 = vpop.f32.mrf.mxu0
    %v996 = vadd.f32 0.0, %v995
    %997 = vdwg.mxu0
    %998 = vmatpush.msra.mxu0 0.0
    %999 = vmatpush.msra.mxu0 0.0
    %1000 = vmatpush.msra.mxu0 0.0
    %1001 = vmatpush.msra.mxu0 0.0
    %1002 = vmatpush.msra.mxu0 0.0
    %1003 = vmatpush.msra.mxu0 0.0
    %1004 = vmatpush.msra.mxu0 0.0
    %1005 = vmatpush.msra.mxu0 0.0
    %1006 = vmatpush.msra.mxu0 0.0
    %1007 = vmatpush.msra.mxu0 0.0
    %1008 = vmatpush.msra.mxu0 0.0
    %1009 = vmatpush.msra.mxu0 0.0
    %1010 = vmatpush.msra.mxu0 %v81
    %1011 = vmatpush.msra.mxu0 %v80
    %1012 = vmatpush.msra.mxu0 %v79
    %1013 = vmatpush.msra.mxu0 %v78
    %1014 = vmatmul.f32.gmra.mxu0 %v896
    %v1015 = vpop.f32.mrf.mxu0
    %v1016 = vadd.f32 %v996, %v1015
    %1017 = vdwg.mxu0
    %v1018 = vadd.f32 %v1016, %v85
    %v1019 = vxor.u32 %v1018, 2147483648
    %v1020 = vmul.f32 %v1019, 1.442695
    %v1021 = vpow.pop %v1020
    %v1022 = vadd.f32 %v1021, 1.0
    %v1023 = vrcp.pop %v1022
    %v1024 = vmul.f32 %v1022, %v1023
    %v1025 = vsub.f32 1.0, %v1024
    %v1026 = vmul.f32 %v1023, %v1025
    %v1027 = vadd.f32 %v1023, %v1026
    %vm1028 = vweird.f32 %v1022
    %vm1029 = vweird.f32 %v1023
    %vm1030 = vmor %vm1028, %vm1029
    %v1031 = vsel %vm1030, %v1023, %v1027
    %v1032 = vand.u32 2147483647, %v1022
    %vm1033 = vcmp.eq.f32.partialorder %v1032, 8.507059e+37
    %v1034 = vand.u32 %v1022, 2147483648
    %v1035 = vor.u32 1.1754944e-38, %v1034
    %v1036 = vsel %vm1033, %v1035, %v1031
    %v1037 = vmul.f32 1.0, %v1036
    %v1038 = vtanh.pop %v1018
    %v1039 = vmul.f32 %v1037, %v817
    %1041 = vrot.lane.b32.xlu0 %v1038, 64
    %v1042 = vpop.permute.xlu0 %1041
    %v1044 = vmul.f32 %v1037, %v1042
    %1046 = vrot.lane.b32.xlu0 %v1044, 32
    %v1047 = vpop.permute.xlu0 %1046
    %v1049 = vadd.f32 %v1039, %v1047
    %v1050 = vtanh.pop %v1049
    %1052 = vrot.lane.b32.xlu0 %v1050, 64
    %v1053 = vpop.permute.xlu0 %1052
    %v1055 = vmul.f32 %v1037, %v1053
    %1057 = vrot.lane.b32.xlu0 %v1055, 32
    %v1058 = vpop.permute.xlu0 %1057
    %s1060 = scalar_lea.vmem [#allocation2], 4
    %1061 = vst.msk [vmem:[%s1060] sm:$0x3] %vm596, %v1058
    %1063 = vrot.lane.b32.xlu0 %v892, 32
    %v1064 = vpop.permute.xlu0 %1063
    %v1065 = vsel %vm165, %v1064, 0
    %1067 = vmatpush.msra.mxu0 0.0
    %1068 = vmatpush.msra.mxu0 0.0
    %1069 = vmatpush.msra.mxu0 0.0
    %1070 = vmatpush.msra.mxu0 0.0
    %1071 = vmatpush.msra.mxu0 0.0
    %1072 = vmatpush.msra.mxu0 0.0
    %1073 = vmatpush.msra.mxu0 0.0
    %1074 = vmatpush.msra.mxu0 0.0
    %1075 = vmatpush.msra.mxu0 0.0
    %1076 = vmatpush.msra.mxu0 0.0
    %1077 = vmatpush.msra.mxu0 0.0
    %1078 = vmatpush.msra.mxu0 0.0
    %1079 = vmatpush.msra.mxu0 %v62
    %1080 = vmatpush.msra.mxu0 %v61
    %1081 = vmatpush.msra.mxu0 %v60
    %1082 = vmatpush.msra.mxu0 %v59
    %1083 = vmatmul.f32.gmra.mxu0 %v1065
    %v1084 = vpop.f32.mrf.mxu0
    %v1085 = vadd.f32 0.0, %v1084
    %1086 = vdwg.mxu0
    %v1087 = vadd.f32 %v162, %v1085
    %v1088 = vxor.u32 %v1087, 2147483648
    %v1089 = vmul.f32 %v1088, 1.442695
    %v1090 = vpow.pop %v1089
    %v1091 = vadd.f32 %v1090, 1.0
    %v1092 = vrcp.pop %v1091
    %v1093 = vmul.f32 %v1091, %v1092
    %v1094 = vsub.f32 1.0, %v1093
    %v1095 = vmul.f32 %v1092, %v1094
    %v1096 = vadd.f32 %v1092, %v1095
    %vm1097 = vweird.f32 %v1091
    %vm1098 = vweird.f32 %v1092
    %vm1099 = vmor %vm1097, %vm1098
    %v1100 = vsel %vm1099, %v1092, %v1096
    %v1101 = vand.u32 2147483647, %v1091
    %vm1102 = vcmp.eq.f32.partialorder %v1101, 8.507059e+37
    %v1103 = vand.u32 %v1091, 2147483648
    %v1104 = vor.u32 1.1754944e-38, %v1103
    %v1105 = vsel %vm1102, %v1104, %v1100
    %v1106 = vmul.f32 1.0, %v1105
    %v1107 = vtanh.pop %v1087
    %v1108 = vmul.f32 %v1106, %v886
    %1110 = vrot.lane.b32.xlu0 %v1107, 64
    %v1111 = vpop.permute.xlu0 %1110
    %v1113 = vmul.f32 %v1106, %v1111
    %1115 = vrot.lane.b32.xlu0 %v1113, 32
    %v1116 = vpop.permute.xlu0 %1115
    %v1118 = vadd.f32 %v1108, %v1116
    %v1119 = vtanh.pop %v1118
    %1121 = vrot.lane.b32.xlu0 %v1119, 64
    %v1122 = vpop.permute.xlu0 %1121
    %v1124 = vmul.f32 %v1106, %v1122
    %1126 = vrot.lane.b32.xlu0 %v975, 32
    %v1127 = vpop.permute.xlu0 %1126
    %v1128 = vsel %vm165, %v1127, 0
    %1130 = vmatpush.msra.mxu0 0.0
    %1131 = vmatpush.msra.mxu0 0.0
    %1132 = vmatpush.msra.mxu0 0.0
    %1133 = vmatpush.msra.mxu0 0.0
    %1134 = vmatpush.msra.mxu0 0.0
    %1135 = vmatpush.msra.mxu0 0.0
    %1136 = vmatpush.msra.mxu0 0.0
    %1137 = vmatpush.msra.mxu0 0.0
    %1138 = vmatpush.msra.mxu0 0.0
    %1139 = vmatpush.msra.mxu0 0.0
    %1140 = vmatpush.msra.mxu0 0.0
    %1141 = vmatpush.msra.mxu0 0.0
    %1142 = vmatpush.msra.mxu0 %v67
    %1143 = vmatpush.msra.mxu0 %v66
    %1144 = vmatpush.msra.mxu0 %v65
    %1145 = vmatpush.msra.mxu0 %v64
    %1146 = vmatmul.f32.gmra.mxu0 %v1128
    %v1147 = vpop.f32.mrf.mxu0
    %v1148 = vadd.f32 0.0, %v1147
    %1149 = vdwg.mxu0
    %1150 = vmatpush.msra.mxu0 0.0
    %1151 = vmatpush.msra.mxu0 0.0
    %1152 = vmatpush.msra.mxu0 0.0
    %1153 = vmatpush.msra.mxu0 0.0
    %1154 = vmatpush.msra.mxu0 0.0
    %1155 = vmatpush.msra.mxu0 0.0
    %1156 = vmatpush.msra.mxu0 0.0
    %1157 = vmatpush.msra.mxu0 0.0
    %1158 = vmatpush.msra.mxu0 0.0
    %1159 = vmatpush.msra.mxu0 0.0
    %1160 = vmatpush.msra.mxu0 0.0
    %1161 = vmatpush.msra.mxu0 0.0
    %1162 = vmatpush.msra.mxu0 %v76
    %1163 = vmatpush.msra.mxu0 %v75
    %1164 = vmatpush.msra.mxu0 %v74
    %1165 = vmatpush.msra.mxu0 %v73
    %1166 = vmatmul.f32.gmra.mxu0 %v1065
    %v1167 = vpop.f32.mrf.mxu0
    %v1168 = vadd.f32 %v1148, %v1167
    %1169 = vdwg.mxu0
    %v1170 = vadd.f32 %v1168, %v83
    %v1171 = vxor.u32 %v1170, 2147483648
    %v1172 = vmul.f32 %v1171, 1.442695
    %v1173 = vpow.pop %v1172
    %v1174 = vadd.f32 %v1173, 1.0
    %v1175 = vrcp.pop %v1174
    %v1176 = vmul.f32 %v1174, %v1175
    %v1177 = vsub.f32 1.0, %v1176
    %v1178 = vmul.f32 %v1175, %v1177
    %v1179 = vadd.f32 %v1175, %v1178
    %vm1180 = vweird.f32 %v1174
    %vm1181 = vweird.f32 %v1175
    %vm1182 = vmor %vm1180, %vm1181
    %v1183 = vsel %vm1182, %v1175, %v1179
    %v1184 = vand.u32 2147483647, %v1174
    %vm1185 = vcmp.eq.f32.partialorder %v1184, 8.507059e+37
    %v1186 = vand.u32 %v1174, 2147483648
    %v1187 = vor.u32 1.1754944e-38, %v1186
    %v1188 = vsel %vm1185, %v1187, %v1183
    %v1189 = vmul.f32 1.0, %v1188
    %v1190 = vtanh.pop %v1170
    %v1191 = vmul.f32 %v1189, %v969
    %1193 = vrot.lane.b32.xlu0 %v1190, 64
    %v1194 = vpop.permute.xlu0 %1193
    %v1196 = vmul.f32 %v1189, %v1194
    %1198 = vrot.lane.b32.xlu0 %v1196, 32
    %v1199 = vpop.permute.xlu0 %1198
    %v1201 = vadd.f32 %v1191, %v1199
    %v1202 = vtanh.pop %v1201
    %1204 = vrot.lane.b32.xlu0 %v1202, 64
    %v1205 = vpop.permute.xlu0 %1204
    %v1207 = vmul.f32 %v1189, %v1205
    %v1208 = vsel %vm165, %v1058, 0
    %1210 = vmatpush.msra.mxu0 0.0
    %1211 = vmatpush.msra.mxu0 0.0
    %1212 = vmatpush.msra.mxu0 0.0
    %1213 = vmatpush.msra.mxu0 0.0
    %1214 = vmatpush.msra.mxu0 0.0
    %1215 = vmatpush.msra.mxu0 0.0
    %1216 = vmatpush.msra.mxu0 0.0
    %1217 = vmatpush.msra.mxu0 0.0
    %1218 = vmatpush.msra.mxu0 0.0
    %1219 = vmatpush.msra.mxu0 0.0
    %1220 = vmatpush.msra.mxu0 0.0
    %1221 = vmatpush.msra.mxu0 0.0
    %1222 = vmatpush.msra.mxu0 %v72
    %1223 = vmatpush.msra.mxu0 %v71
    %1224 = vmatpush.msra.mxu0 %v70
    %1225 = vmatpush.msra.mxu0 %v69
    %1226 = vmatmul.f32.gmra.mxu0 %v1208
    %v1227 = vpop.f32.mrf.mxu0
    %v1228 = vadd.f32 0.0, %v1227
    %1229 = vdwg.mxu0
    %1230 = vmatpush.msra.mxu0 0.0
    %1231 = vmatpush.msra.mxu0 0.0
    %1232 = vmatpush.msra.mxu0 0.0
    %1233 = vmatpush.msra.mxu0 0.0
    %1234 = vmatpush.msra.mxu0 0.0
    %1235 = vmatpush.msra.mxu0 0.0
    %1236 = vmatpush.msra.mxu0 0.0
    %1237 = vmatpush.msra.mxu0 0.0
    %1238 = vmatpush.msra.mxu0 0.0
    %1239 = vmatpush.msra.mxu0 0.0
    %1240 = vmatpush.msra.mxu0 0.0
    %1241 = vmatpush.msra.mxu0 0.0
    %1242 = vmatpush.msra.mxu0 %v81
    %1243 = vmatpush.msra.mxu0 %v80
    %1244 = vmatpush.msra.mxu0 %v79
    %1245 = vmatpush.msra.mxu0 %v78
    %1246 = vmatmul.f32.gmra.mxu0 %v1128
    %v1247 = vpop.f32.mrf.mxu0
    %v1248 = vadd.f32 %v1228, %v1247
    %1249 = vdwg.mxu0
    %v1250 = vadd.f32 %v1248, %v85
    %v1251 = vxor.u32 %v1250, 2147483648
    %v1252 = vmul.f32 %v1251, 1.442695
    %v1253 = vpow.pop %v1252
    %v1254 = vadd.f32 %v1253, 1.0
    %v1255 = vrcp.pop %v1254
    %v1256 = vmul.f32 %v1254, %v1255
    %v1257 = vsub.f32 1.0, %v1256
    %v1258 = vmul.f32 %v1255, %v1257
    %v1259 = vadd.f32 %v1255, %v1258
    %vm1260 = vweird.f32 %v1254
    %vm1261 = vweird.f32 %v1255
    %vm1262 = vmor %vm1260, %vm1261
    %v1263 = vsel %vm1262, %v1255, %v1259
    %v1264 = vand.u32 2147483647, %v1254
    %vm1265 = vcmp.eq.f32.partialorder %v1264, 8.507059e+37
    %v1266 = vand.u32 %v1254, 2147483648
    %v1267 = vor.u32 1.1754944e-38, %v1266
    %v1268 = vsel %vm1265, %v1267, %v1263
    %v1269 = vmul.f32 1.0, %v1268
    %v1270 = vtanh.pop %v1250
    %v1271 = vmul.f32 %v1269, %v1049
    %1273 = vrot.lane.b32.xlu0 %v1270, 64
    %v1274 = vpop.permute.xlu0 %1273
    %v1276 = vmul.f32 %v1269, %v1274
    %1278 = vrot.lane.b32.xlu0 %v1276, 32
    %v1279 = vpop.permute.xlu0 %1278
    %v1281 = vadd.f32 %v1271, %v1279
    %v1282 = vtanh.pop %v1281
    %1284 = vrot.lane.b32.xlu0 %v1282, 64
    %v1285 = vpop.permute.xlu0 %1284
    %v1287 = vmul.f32 %v1269, %v1285
    %1289 = vrot.lane.b32.xlu0 %v1287, 32
    %v1290 = vpop.permute.xlu0 %1289
    %s1292 = scalar_lea.vmem [#allocation2], 6
    %1293 = vst.msk [vmem:[%s1292] sm:$0x3] %vm596, %v1290
    %1295 = vrot.lane.b32.xlu0 %v1124, 32
    %v1296 = vpop.permute.xlu0 %1295
    %v1297 = vsel %vm165, %v1296, 0
    %1299 = vmatpush.msra.mxu0 0.0
    %1300 = vmatpush.msra.mxu0 0.0
    %1301 = vmatpush.msra.mxu0 0.0
    %1302 = vmatpush.msra.mxu0 0.0
    %1303 = vmatpush.msra.mxu0 0.0
    %1304 = vmatpush.msra.mxu0 0.0
    %1305 = vmatpush.msra.mxu0 0.0
    %1306 = vmatpush.msra.mxu0 0.0
    %1307 = vmatpush.msra.mxu0 0.0
    %1308 = vmatpush.msra.mxu0 0.0
    %1309 = vmatpush.msra.mxu0 0.0
    %1310 = vmatpush.msra.mxu0 0.0
    %1311 = vmatpush.msra.mxu0 %v62
    %1312 = vmatpush.msra.mxu0 %v61
    %1313 = vmatpush.msra.mxu0 %v60
    %1314 = vmatpush.msra.mxu0 %v59
    %1315 = vmatmul.f32.gmra.mxu0 %v1297
    %v1316 = vpop.f32.mrf.mxu0
    %v1317 = vadd.f32 0.0, %v1316
    %1318 = vdwg.mxu0
    %v1319 = vadd.f32 %v163, %v1317
    %v1320 = vxor.u32 %v1319, 2147483648
    %v1321 = vmul.f32 %v1320, 1.442695
    %v1322 = vpow.pop %v1321
    %v1323 = vadd.f32 %v1322, 1.0
    %v1324 = vrcp.pop %v1323
    %v1325 = vmul.f32 %v1323, %v1324
    %v1326 = vsub.f32 1.0, %v1325
    %v1327 = vmul.f32 %v1324, %v1326
    %v1328 = vadd.f32 %v1324, %v1327
    %vm1329 = vweird.f32 %v1323
    %vm1330 = vweird.f32 %v1324
    %vm1331 = vmor %vm1329, %vm1330
    %v1332 = vsel %vm1331, %v1324, %v1328
    %v1333 = vand.u32 2147483647, %v1323
    %vm1334 = vcmp.eq.f32.partialorder %v1333, 8.507059e+37
    %v1335 = vand.u32 %v1323, 2147483648
    %v1336 = vor.u32 1.1754944e-38, %v1335
    %v1337 = vsel %vm1334, %v1336, %v1332
    %v1338 = vmul.f32 1.0, %v1337
    %v1339 = vtanh.pop %v1319
    %v1340 = vmul.f32 %v1338, %v1118
    %1342 = vrot.lane.b32.xlu0 %v1339, 64
    %v1343 = vpop.permute.xlu0 %1342
    %v1345 = vmul.f32 %v1338, %v1343
    %1347 = vrot.lane.b32.xlu0 %v1345, 32
    %v1348 = vpop.permute.xlu0 %1347
    %v1350 = vadd.f32 %v1340, %v1348
    %v1351 = vtanh.pop %v1350
    %1353 = vrot.lane.b32.xlu0 %v1351, 64
    %v1354 = vpop.permute.xlu0 %1353
    %v1356 = vmul.f32 %v1338, %v1354
    %1358 = vrot.lane.b32.xlu0 %v1207, 32
    %v1359 = vpop.permute.xlu0 %1358
    %v1360 = vsel %vm165, %v1359, 0
    %1362 = vmatpush.msra.mxu0 0.0
    %1363 = vmatpush.msra.mxu0 0.0
    %1364 = vmatpush.msra.mxu0 0.0
    %1365 = vmatpush.msra.mxu0 0.0
    %1366 = vmatpush.msra.mxu0 0.0
    %1367 = vmatpush.msra.mxu0 0.0
    %1368 = vmatpush.msra.mxu0 0.0
    %1369 = vmatpush.msra.mxu0 0.0
    %1370 = vmatpush.msra.mxu0 0.0
    %1371 = vmatpush.msra.mxu0 0.0
    %1372 = vmatpush.msra.mxu0 0.0
    %1373 = vmatpush.msra.mxu0 0.0
    %1374 = vmatpush.msra.mxu0 %v67
    %1375 = vmatpush.msra.mxu0 %v66
    %1376 = vmatpush.msra.mxu0 %v65
    %1377 = vmatpush.msra.mxu0 %v64
    %1378 = vmatmul.f32.gmra.mxu0 %v1360
    %v1379 = vpop.f32.mrf.mxu0
    %v1380 = vadd.f32 0.0, %v1379
    %1381 = vdwg.mxu0
    %1382 = vmatpush.msra.mxu0 0.0
    %1383 = vmatpush.msra.mxu0 0.0
    %1384 = vmatpush.msra.mxu0 0.0
    %1385 = vmatpush.msra.mxu0 0.0
    %1386 = vmatpush.msra.mxu0 0.0
    %1387 = vmatpush.msra.mxu0 0.0
    %1388 = vmatpush.msra.mxu0 0.0
    %1389 = vmatpush.msra.mxu0 0.0
    %1390 = vmatpush.msra.mxu0 0.0
    %1391 = vmatpush.msra.mxu0 0.0
    %1392 = vmatpush.msra.mxu0 0.0
    %1393 = vmatpush.msra.mxu0 0.0
    %1394 = vmatpush.msra.mxu0 %v76
    %1395 = vmatpush.msra.mxu0 %v75
    %1396 = vmatpush.msra.mxu0 %v74
    %1397 = vmatpush.msra.mxu0 %v73
    %1398 = vmatmul.f32.gmra.mxu0 %v1297
    %v1399 = vpop.f32.mrf.mxu0
    %v1400 = vadd.f32 %v1380, %v1399
    %1401 = vdwg.mxu0
    %v1402 = vadd.f32 %v1400, %v83
    %v1403 = vxor.u32 %v1402, 2147483648
    %v1404 = vmul.f32 %v1403, 1.442695
    %v1405 = vpow.pop %v1404
    %v1406 = vadd.f32 %v1405, 1.0
    %v1407 = vrcp.pop %v1406
    %v1408 = vmul.f32 %v1406, %v1407
    %v1409 = vsub.f32 1.0, %v1408
    %v1410 = vmul.f32 %v1407, %v1409
    %v1411 = vadd.f32 %v1407, %v1410
    %vm1412 = vweird.f32 %v1406
    %vm1413 = vweird.f32 %v1407
    %vm1414 = vmor %vm1412, %vm1413
    %v1415 = vsel %vm1414, %v1407, %v1411
    %v1416 = vand.u32 2147483647, %v1406
    %vm1417 = vcmp.eq.f32.partialorder %v1416, 8.507059e+37
    %v1418 = vand.u32 %v1406, 2147483648
    %v1419 = vor.u32 1.1754944e-38, %v1418
    %v1420 = vsel %vm1417, %v1419, %v1415
    %v1421 = vmul.f32 1.0, %v1420
    %v1422 = vtanh.pop %v1402
    %v1423 = vmul.f32 %v1421, %v1201
    %1425 = vrot.lane.b32.xlu0 %v1422, 64
    %v1426 = vpop.permute.xlu0 %1425
    %v1428 = vmul.f32 %v1421, %v1426
    %1430 = vrot.lane.b32.xlu0 %v1428, 32
    %v1431 = vpop.permute.xlu0 %1430
    %v1433 = vadd.f32 %v1423, %v1431
    %v1434 = vtanh.pop %v1433
    %1436 = vrot.lane.b32.xlu0 %v1434, 64
    %v1437 = vpop.permute.xlu0 %1436
    %v1439 = vmul.f32 %v1421, %v1437
    %v1440 = vsel %vm165, %v1290, 0
    %1442 = vmatpush.msra.mxu0 0.0
    %1443 = vmatpush.msra.mxu0 0.0
    %1444 = vmatpush.msra.mxu0 0.0
    %1445 = vmatpush.msra.mxu0 0.0
    %1446 = vmatpush.msra.mxu0 0.0
    %1447 = vmatpush.msra.mxu0 0.0
    %1448 = vmatpush.msra.mxu0 0.0
    %1449 = vmatpush.msra.mxu0 0.0
    %1450 = vmatpush.msra.mxu0 0.0
    %1451 = vmatpush.msra.mxu0 0.0
    %1452 = vmatpush.msra.mxu0 0.0
    %1453 = vmatpush.msra.mxu0 0.0
    %1454 = vmatpush.msra.mxu0 %v72
    %1455 = vmatpush.msra.mxu0 %v71
    %1456 = vmatpush.msra.mxu0 %v70
    %1457 = vmatpush.msra.mxu0 %v69
    %1458 = vmatmul.f32.gmra.mxu0 %v1440
    %v1459 = vpop.f32.mrf.mxu0
    %v1460 = vadd.f32 0.0, %v1459
    %1461 = vdwg.mxu0
    %1462 = vmatpush.msra.mxu0 0.0
    %1463 = vmatpush.msra.mxu0 0.0
    %1464 = vmatpush.msra.mxu0 0.0
    %1465 = vmatpush.msra.mxu0 0.0
    %1466 = vmatpush.msra.mxu0 0.0
    %1467 = vmatpush.msra.mxu0 0.0
    %1468 = vmatpush.msra.mxu0 0.0
    %1469 = vmatpush.msra.mxu0 0.0
    %1470 = vmatpush.msra.mxu0 0.0
    %1471 = vmatpush.msra.mxu0 0.0
    %1472 = vmatpush.msra.mxu0 0.0
    %1473 = vmatpush.msra.mxu0 0.0
    %1474 = vmatpush.msra.mxu0 %v81
    %1475 = vmatpush.msra.mxu0 %v80
    %1476 = vmatpush.msra.mxu0 %v79
    %1477 = vmatpush.msra.mxu0 %v78
    %1478 = vmatmul.f32.gmra.mxu0 %v1360
    %v1479 = vpop.f32.mrf.mxu0
    %v1480 = vadd.f32 %v1460, %v1479
    %1481 = vdwg.mxu0
    %v1482 = vadd.f32 %v1480, %v85
    %v1483 = vxor.u32 %v1482, 2147483648
    %v1484 = vmul.f32 %v1483, 1.442695
    %v1485 = vpow.pop %v1484
    %v1486 = vadd.f32 %v1485, 1.0
    %v1487 = vrcp.pop %v1486
    %v1488 = vmul.f32 %v1486, %v1487
    %v1489 = vsub.f32 1.0, %v1488
    %v1490 = vmul.f32 %v1487, %v1489
    %v1491 = vadd.f32 %v1487, %v1490
    %vm1492 = vweird.f32 %v1486
    %vm1493 = vweird.f32 %v1487
    %vm1494 = vmor %vm1492, %vm1493
    %v1495 = vsel %vm1494, %v1487, %v1491
    %v1496 = vand.u32 2147483647, %v1486
    %vm1497 = vcmp.eq.f32.partialorder %v1496, 8.507059e+37
    %v1498 = vand.u32 %v1486, 2147483648
    %v1499 = vor.u32 1.1754944e-38, %v1498
    %v1500 = vsel %vm1497, %v1499, %v1495
    %v1501 = vmul.f32 1.0, %v1500
    %v1502 = vtanh.pop %v1482
    %v1503 = vmul.f32 %v1501, %v1281
    %1505 = vrot.lane.b32.xlu0 %v1502, 64
    %v1506 = vpop.permute.xlu0 %1505
    %v1508 = vmul.f32 %v1501, %v1506
    %1510 = vrot.lane.b32.xlu0 %v1508, 32
    %v1511 = vpop.permute.xlu0 %1510
    %v1513 = vadd.f32 %v1503, %v1511
    %v1514 = vtanh.pop %v1513
    %1516 = vrot.lane.b32.xlu0 %v1514, 64
    %v1517 = vpop.permute.xlu0 %1516
    %v1519 = vmul.f32 %v1501, %v1517
    %1521 = vrot.lane.b32.xlu0 %v1519, 32
    %v1522 = vpop.permute.xlu0 %1521
    %s1524 = scalar_lea.vmem [#allocation2], 8
    %1525 = vst.msk [vmem:[%s1524] sm:$0x3] %vm596, %v1522
    %1527 = vrot.lane.b32.xlu0 %v1356, 32
    %v1528 = vpop.permute.xlu0 %1527
    %v1529 = vsel %vm165, %v1528, 0
    %1531 = vmatpush.msra.mxu0 0.0
    %1532 = vmatpush.msra.mxu0 0.0
    %1533 = vmatpush.msra.mxu0 0.0
    %1534 = vmatpush.msra.mxu0 0.0
    %1535 = vmatpush.msra.mxu0 0.0
    %1536 = vmatpush.msra.mxu0 0.0
    %1537 = vmatpush.msra.mxu0 0.0
    %1538 = vmatpush.msra.mxu0 0.0
    %1539 = vmatpush.msra.mxu0 0.0
    %1540 = vmatpush.msra.mxu0 0.0
    %1541 = vmatpush.msra.mxu0 0.0
    %1542 = vmatpush.msra.mxu0 0.0
    %1543 = vmatpush.msra.mxu0 %v62
    %1544 = vmatpush.msra.mxu0 %v61
    %1545 = vmatpush.msra.mxu0 %v60
    %1546 = vmatpush.msra.mxu0 %v59
    %1547 = vmatmul.f32.gmra.mxu0 %v1529
    %v1548 = vpop.f32.mrf.mxu0
    %v1549 = vadd.f32 0.0, %v1548
    %1550 = vdwg.mxu0
    %v1551 = vadd.f32 %v164, %v1549
    %v1552 = vxor.u32 %v1551, 2147483648
    %v1553 = vmul.f32 %v1552, 1.442695
    %v1554 = vpow.pop %v1553
    %v1555 = vadd.f32 %v1554, 1.0
    %v1556 = vrcp.pop %v1555
    %v1557 = vmul.f32 %v1555, %v1556
    %v1558 = vsub.f32 1.0, %v1557
    %v1559 = vmul.f32 %v1556, %v1558
    %v1560 = vadd.f32 %v1556, %v1559
    %vm1561 = vweird.f32 %v1555
    %vm1562 = vweird.f32 %v1556
    %vm1563 = vmor %vm1561, %vm1562
    %v1564 = vsel %vm1563, %v1556, %v1560
    %v1565 = vand.u32 2147483647, %v1555
    %vm1566 = vcmp.eq.f32.partialorder %v1565, 8.507059e+37
    %v1567 = vand.u32 %v1555, 2147483648
    %v1568 = vor.u32 1.1754944e-38, %v1567
    %v1569 = vsel %vm1566, %v1568, %v1564
    %v1570 = vmul.f32 1.0, %v1569
    %v1571 = vtanh.pop %v1551
    %v1572 = vmul.f32 %v1570, %v1350
    %1574 = vrot.lane.b32.xlu0 %v1571, 64
    %v1575 = vpop.permute.xlu0 %1574
    %v1577 = vmul.f32 %v1570, %v1575
    %1579 = vrot.lane.b32.xlu0 %v1577, 32
    %v1580 = vpop.permute.xlu0 %1579
    %v1582 = vadd.f32 %v1572, %v1580
    %v1583 = vtanh.pop %v1582
    %1585 = vrot.lane.b32.xlu0 %v1583, 64
    %v1586 = vpop.permute.xlu0 %1585
    %v1588 = vmul.f32 %v1570, %v1586
    %1590 = vrot.lane.b32.xlu0 %v1439, 32
    %v1591 = vpop.permute.xlu0 %1590
    %v1592 = vsel %vm165, %v1591, 0
    %1594 = vmatpush.msra.mxu0 0.0
    %1595 = vmatpush.msra.mxu0 0.0
    %1596 = vmatpush.msra.mxu0 0.0
    %1597 = vmatpush.msra.mxu0 0.0
    %1598 = vmatpush.msra.mxu0 0.0
    %1599 = vmatpush.msra.mxu0 0.0
    %1600 = vmatpush.msra.mxu0 0.0
    %1601 = vmatpush.msra.mxu0 0.0
    %1602 = vmatpush.msra.mxu0 0.0
    %1603 = vmatpush.msra.mxu0 0.0
    %1604 = vmatpush.msra.mxu0 0.0
    %1605 = vmatpush.msra.mxu0 0.0
    %1606 = vmatpush.msra.mxu0 %v67
    %1607 = vmatpush.msra.mxu0 %v66
    %1608 = vmatpush.msra.mxu0 %v65
    %1609 = vmatpush.msra.mxu0 %v64
    %1610 = vmatmul.f32.gmra.mxu0 %v1592
    %v1611 = vpop.f32.mrf.mxu0
    %v1612 = vadd.f32 0.0, %v1611
    %1613 = vdwg.mxu0
    %1614 = vmatpush.msra.mxu0 0.0
    %1615 = vmatpush.msra.mxu0 0.0
    %1616 = vmatpush.msra.mxu0 0.0
    %1617 = vmatpush.msra.mxu0 0.0
    %1618 = vmatpush.msra.mxu0 0.0
    %1619 = vmatpush.msra.mxu0 0.0
    %1620 = vmatpush.msra.mxu0 0.0
    %1621 = vmatpush.msra.mxu0 0.0
    %1622 = vmatpush.msra.mxu0 0.0
    %1623 = vmatpush.msra.mxu0 0.0
    %1624 = vmatpush.msra.mxu0 0.0
    %1625 = vmatpush.msra.mxu0 0.0
    %1626 = vmatpush.msra.mxu0 %v76
    %1627 = vmatpush.msra.mxu0 %v75
    %1628 = vmatpush.msra.mxu0 %v74
    %1629 = vmatpush.msra.mxu0 %v73
    %1630 = vmatmul.f32.gmra.mxu0 %v1529
    %v1631 = vpop.f32.mrf.mxu0
    %v1632 = vadd.f32 %v1612, %v1631
    %1633 = vdwg.mxu0
    %v1634 = vadd.f32 %v1632, %v83
    %v1635 = vxor.u32 %v1634, 2147483648
    %v1636 = vmul.f32 %v1635, 1.442695
    %v1637 = vpow.pop %v1636
    %v1638 = vadd.f32 %v1637, 1.0
    %v1639 = vrcp.pop %v1638
    %v1640 = vmul.f32 %v1638, %v1639
    %v1641 = vsub.f32 1.0, %v1640
    %v1642 = vmul.f32 %v1639, %v1641
    %v1643 = vadd.f32 %v1639, %v1642
    %vm1644 = vweird.f32 %v1638
    %vm1645 = vweird.f32 %v1639
    %vm1646 = vmor %vm1644, %vm1645
    %v1647 = vsel %vm1646, %v1639, %v1643
    %v1648 = vand.u32 2147483647, %v1638
    %vm1649 = vcmp.eq.f32.partialorder %v1648, 8.507059e+37
    %v1650 = vand.u32 %v1638, 2147483648
    %v1651 = vor.u32 1.1754944e-38, %v1650
    %v1652 = vsel %vm1649, %v1651, %v1647
    %v1653 = vmul.f32 1.0, %v1652
    %v1654 = vtanh.pop %v1634
    %v1655 = vmul.f32 %v1653, %v1433
    %1657 = vrot.lane.b32.xlu0 %v1654, 64
    %v1658 = vpop.permute.xlu0 %1657
    %v1660 = vmul.f32 %v1653, %v1658
    %1662 = vrot.lane.b32.xlu0 %v1660, 32
    %v1663 = vpop.permute.xlu0 %1662
    %v1665 = vadd.f32 %v1655, %v1663
    %v1666 = vtanh.pop %v1665
    %1668 = vrot.lane.b32.xlu0 %v1666, 64
    %v1669 = vpop.permute.xlu0 %1668
    %v1671 = vmul.f32 %v1653, %v1669
    %v1672 = vsel %vm165, %v1522, 0
    %1674 = vmatpush.msra.mxu0 0.0
    %1675 = vmatpush.msra.mxu0 0.0
    %1676 = vmatpush.msra.mxu0 0.0
    %1677 = vmatpush.msra.mxu0 0.0
    %1678 = vmatpush.msra.mxu0 0.0
    %1679 = vmatpush.msra.mxu0 0.0
    %1680 = vmatpush.msra.mxu0 0.0
    %1681 = vmatpush.msra.mxu0 0.0
    %1682 = vmatpush.msra.mxu0 0.0
    %1683 = vmatpush.msra.mxu0 0.0
    %1684 = vmatpush.msra.mxu0 0.0
    %1685 = vmatpush.msra.mxu0 0.0
    %1686 = vmatpush.msra.mxu0 %v72
    %1687 = vmatpush.msra.mxu0 %v71
    %1688 = vmatpush.msra.mxu0 %v70
    %1689 = vmatpush.msra.mxu0 %v69
    %1690 = vmatmul.f32.gmra.mxu0 %v1672
    %v1691 = vpop.f32.mrf.mxu0
    %v1692 = vadd.f32 0.0, %v1691
    %1693 = vdwg.mxu0
    %1694 = vmatpush.msra.mxu0 0.0
    %1695 = vmatpush.msra.mxu0 0.0
    %1696 = vmatpush.msra.mxu0 0.0
    %1697 = vmatpush.msra.mxu0 0.0
    %1698 = vmatpush.msra.mxu0 0.0
    %1699 = vmatpush.msra.mxu0 0.0
    %1700 = vmatpush.msra.mxu0 0.0
    %1701 = vmatpush.msra.mxu0 0.0
    %1702 = vmatpush.msra.mxu0 0.0
    %1703 = vmatpush.msra.mxu0 0.0
    %1704 = vmatpush.msra.mxu0 0.0
    %1705 = vmatpush.msra.mxu0 0.0
    %1706 = vmatpush.msra.mxu0 %v81
    %1707 = vmatpush.msra.mxu0 %v80
    %1708 = vmatpush.msra.mxu0 %v79
    %1709 = vmatpush.msra.mxu0 %v78
    %1710 = vmatmul.f32.gmra.mxu0 %v1592
    %v1711 = vpop.f32.mrf.mxu0
    %v1712 = vadd.f32 %v1692, %v1711
    %1713 = vdwg.mxu0
    %v1714 = vadd.f32 %v1712, %v85
    %v1715 = vxor.u32 %v1714, 2147483648
    %v1716 = vmul.f32 %v1715, 1.442695
    %v1717 = vpow.pop %v1716
    %v1718 = vadd.f32 %v1717, 1.0
    %v1719 = vrcp.pop %v1718
    %v1720 = vmul.f32 %v1718, %v1719
    %v1721 = vsub.f32 1.0, %v1720
    %v1722 = vmul.f32 %v1719, %v1721
    %v1723 = vadd.f32 %v1719, %v1722
    %vm1724 = vweird.f32 %v1718
    %vm1725 = vweird.f32 %v1719
    %vm1726 = vmor %vm1724, %vm1725
    %v1727 = vsel %vm1726, %v1719, %v1723
    %v1728 = vand.u32 2147483647, %v1718
    %vm1729 = vcmp.eq.f32.partialorder %v1728, 8.507059e+37
    %v1730 = vand.u32 %v1718, 2147483648
    %v1731 = vor.u32 1.1754944e-38, %v1730
    %v1732 = vsel %vm1729, %v1731, %v1727
    %v1733 = vmul.f32 1.0, %v1732
    %v1734 = vtanh.pop %v1714
    %v1735 = vmul.f32 %v1733, %v1513
    %1737 = vrot.lane.b32.xlu0 %v1734, 64
    %v1738 = vpop.permute.xlu0 %1737
    %v1740 = vmul.f32 %v1733, %v1738
    %1742 = vrot.lane.b32.xlu0 %v1740, 32
    %v1743 = vpop.permute.xlu0 %1742
    %v1745 = vadd.f32 %v1735, %v1743
    %v1746 = vtanh.pop %v1745
    %1748 = vrot.lane.b32.xlu0 %v1746, 64
    %v1749 = vpop.permute.xlu0 %1748
    %v1751 = vmul.f32 %v1733, %v1749
    %1753 = vrot.lane.b32.xlu0 %v1751, 32
    %v1754 = vpop.permute.xlu0 %1753
    %s1756 = scalar_lea.vmem [#allocation2], 10
    %1757 = vst.msk [vmem:[%s1756] sm:$0x3] %vm596, %v1754
    %1759 = vrot.lane.b32.xlu0 %v1671, 32
    %v1760 = vpop.permute.xlu0 %1759
    %v1761 = vsel %vm165, %v1760, 0
    %1763 = vmatpush.msra.mxu0 0.0
    %1764 = vmatpush.msra.mxu0 0.0
    %1765 = vmatpush.msra.mxu0 0.0
    %1766 = vmatpush.msra.mxu0 0.0
    %1767 = vmatpush.msra.mxu0 0.0
    %1768 = vmatpush.msra.mxu0 0.0
    %1769 = vmatpush.msra.mxu0 0.0
    %1770 = vmatpush.msra.mxu0 0.0
    %1771 = vmatpush.msra.mxu0 0.0
    %1772 = vmatpush.msra.mxu0 0.0
    %1773 = vmatpush.msra.mxu0 0.0
    %1774 = vmatpush.msra.mxu0 0.0
    %1775 = vmatpush.msra.mxu0 %v67
    %1776 = vmatpush.msra.mxu0 %v66
    %1777 = vmatpush.msra.mxu0 %v65
    %1778 = vmatpush.msra.mxu0 %v64
    %1779 = vmatmul.f32.gmra.mxu0 %v1761
    %v1780 = vpop.f32.mrf.mxu0
    %v1781 = vadd.f32 0.0, %v1780
    %1782 = vdwg.mxu0
    %1784 = vrot.lane.b32.xlu0 %v1588, 32
    %v1785 = vpop.permute.xlu0 %1784
    %v1786 = vsel %vm165, %v1785, 0
    %1788 = vmatpush.msra.mxu0 0.0
    %1789 = vmatpush.msra.mxu0 0.0
    %1790 = vmatpush.msra.mxu0 0.0
    %1791 = vmatpush.msra.mxu0 0.0
    %1792 = vmatpush.msra.mxu0 0.0
    %1793 = vmatpush.msra.mxu0 0.0
    %1794 = vmatpush.msra.mxu0 0.0
    %1795 = vmatpush.msra.mxu0 0.0
    %1796 = vmatpush.msra.mxu0 0.0
    %1797 = vmatpush.msra.mxu0 0.0
    %1798 = vmatpush.msra.mxu0 0.0
    %1799 = vmatpush.msra.mxu0 0.0
    %1800 = vmatpush.msra.mxu0 %v76
    %1801 = vmatpush.msra.mxu0 %v75
    %1802 = vmatpush.msra.mxu0 %v74
    %1803 = vmatpush.msra.mxu0 %v73
    %1804 = vmatmul.f32.gmra.mxu0 %v1786
    %v1805 = vpop.f32.mrf.mxu0
    %v1806 = vadd.f32 %v1781, %v1805
    %1807 = vdwg.mxu0
    %v1808 = vadd.f32 %v1806, %v83
    %v1809 = vxor.u32 %v1808, 2147483648
    %v1810 = vmul.f32 %v1809, 1.442695
    %v1811 = vpow.pop %v1810
    %v1812 = vadd.f32 %v1811, 1.0
    %v1813 = vrcp.pop %v1812
    %v1814 = vmul.f32 %v1812, %v1813
    %v1815 = vsub.f32 1.0, %v1814
    %v1816 = vmul.f32 %v1813, %v1815
    %v1817 = vadd.f32 %v1813, %v1816
    %vm1818 = vweird.f32 %v1812
    %vm1819 = vweird.f32 %v1813
    %vm1820 = vmor %vm1818, %vm1819
    %v1821 = vsel %vm1820, %v1813, %v1817
    %v1822 = vand.u32 2147483647, %v1812
    %vm1823 = vcmp.eq.f32.partialorder %v1822, 8.507059e+37
    %v1824 = vand.u32 %v1812, 2147483648
    %v1825 = vor.u32 1.1754944e-38, %v1824
    %v1826 = vsel %vm1823, %v1825, %v1821
    %v1827 = vmul.f32 1.0, %v1826
    %v1828 = vtanh.pop %v1808
    %v1829 = vmul.f32 %v1827, %v1665
    %1831 = vrot.lane.b32.xlu0 %v1828, 64
    %v1832 = vpop.permute.xlu0 %1831
    %v1834 = vmul.f32 %v1827, %v1832
    %1836 = vrot.lane.b32.xlu0 %v1834, 32
    %v1837 = vpop.permute.xlu0 %1836
    %v1839 = vadd.f32 %v1829, %v1837
    %v1840 = vtanh.pop %v1839
    %1842 = vrot.lane.b32.xlu0 %v1840, 64
    %v1843 = vpop.permute.xlu0 %1842
    %v1845 = vmul.f32 %v1827, %v1843
    %v1846 = vsel %vm165, %v1754, 0
    %1848 = vmatpush.msra.mxu0 0.0
    %1849 = vmatpush.msra.mxu0 0.0
    %1850 = vmatpush.msra.mxu0 0.0
    %1851 = vmatpush.msra.mxu0 0.0
    %1852 = vmatpush.msra.mxu0 0.0
    %1853 = vmatpush.msra.mxu0 0.0
    %1854 = vmatpush.msra.mxu0 0.0
    %1855 = vmatpush.msra.mxu0 0.0
    %1856 = vmatpush.msra.mxu0 0.0
    %1857 = vmatpush.msra.mxu0 0.0
    %1858 = vmatpush.msra.mxu0 0.0
    %1859 = vmatpush.msra.mxu0 0.0
    %1860 = vmatpush.msra.mxu0 %v72
    %1861 = vmatpush.msra.mxu0 %v71
    %1862 = vmatpush.msra.mxu0 %v70
    %1863 = vmatpush.msra.mxu0 %v69
    %1864 = vmatmul.f32.gmra.mxu0 %v1846
    %v1865 = vpop.f32.mrf.mxu0
    %v1866 = vadd.f32 0.0, %v1865
    %1867 = vdwg.mxu0
    %1868 = vmatpush.msra.mxu0 0.0
    %1869 = vmatpush.msra.mxu0 0.0
    %1870 = vmatpush.msra.mxu0 0.0
    %1871 = vmatpush.msra.mxu0 0.0
    %1872 = vmatpush.msra.mxu0 0.0
    %1873 = vmatpush.msra.mxu0 0.0
    %1874 = vmatpush.msra.mxu0 0.0
    %1875 = vmatpush.msra.mxu0 0.0
    %1876 = vmatpush.msra.mxu0 0.0
    %1877 = vmatpush.msra.mxu0 0.0
    %1878 = vmatpush.msra.mxu0 0.0
    %1879 = vmatpush.msra.mxu0 0.0
    %1880 = vmatpush.msra.mxu0 %v81
    %1881 = vmatpush.msra.mxu0 %v80
    %1882 = vmatpush.msra.mxu0 %v79
    %1883 = vmatpush.msra.mxu0 %v78
    %1884 = vmatmul.f32.gmra.mxu0 %v1761
    %v1885 = vpop.f32.mrf.mxu0
    %v1886 = vadd.f32 %v1866, %v1885
    %1887 = vdwg.mxu0
    %v1888 = vadd.f32 %v1886, %v85
    %v1889 = vxor.u32 %v1888, 2147483648
    %v1890 = vmul.f32 %v1889, 1.442695
    %v1891 = vpow.pop %v1890
    %v1892 = vadd.f32 %v1891, 1.0
    %v1893 = vrcp.pop %v1892
    %v1894 = vmul.f32 %v1892, %v1893
    %v1895 = vsub.f32 1.0, %v1894
    %v1896 = vmul.f32 %v1893, %v1895
    %v1897 = vadd.f32 %v1893, %v1896
    %vm1898 = vweird.f32 %v1892
    %vm1899 = vweird.f32 %v1893
    %vm1900 = vmor %vm1898, %vm1899
    %v1901 = vsel %vm1900, %v1893, %v1897
    %v1902 = vand.u32 2147483647, %v1892
    %vm1903 = vcmp.eq.f32.partialorder %v1902, 8.507059e+37
    %v1904 = vand.u32 %v1892, 2147483648
    %v1905 = vor.u32 1.1754944e-38, %v1904
    %v1906 = vsel %vm1903, %v1905, %v1901
    %v1907 = vmul.f32 1.0, %v1906
    %v1908 = vtanh.pop %v1888
    %v1909 = vmul.f32 %v1907, %v1745
    %1911 = vrot.lane.b32.xlu0 %v1908, 64
    %v1912 = vpop.permute.xlu0 %1911
    %v1914 = vmul.f32 %v1907, %v1912
    %1916 = vrot.lane.b32.xlu0 %v1914, 32
    %v1917 = vpop.permute.xlu0 %1916
    %v1919 = vadd.f32 %v1909, %v1917
    %v1920 = vtanh.pop %v1919
    %1922 = vrot.lane.b32.xlu0 %v1920, 64
    %v1923 = vpop.permute.xlu0 %1922
    %v1925 = vmul.f32 %v1907, %v1923
    %1927 = vrot.lane.b32.xlu0 %v1925, 32
    %v1928 = vpop.permute.xlu0 %1927
    %s1930 = scalar_lea.vmem [#allocation2], 12
    %1931 = vst.msk [vmem:[%s1930] sm:$0x3] %vm596, %v1928
    %v1932 = vsel %vm165, %v1928, 0
    %1934 = vmatpush.msra.mxu0 0.0
    %1935 = vmatpush.msra.mxu0 0.0
    %1936 = vmatpush.msra.mxu0 0.0
    %1937 = vmatpush.msra.mxu0 0.0
    %1938 = vmatpush.msra.mxu0 0.0
    %1939 = vmatpush.msra.mxu0 0.0
    %1940 = vmatpush.msra.mxu0 0.0
    %1941 = vmatpush.msra.mxu0 0.0
    %1942 = vmatpush.msra.mxu0 0.0
    %1943 = vmatpush.msra.mxu0 0.0
    %1944 = vmatpush.msra.mxu0 0.0
    %1945 = vmatpush.msra.mxu0 0.0
    %1946 = vmatpush.msra.mxu0 %v72
    %1947 = vmatpush.msra.mxu0 %v71
    %1948 = vmatpush.msra.mxu0 %v70
    %1949 = vmatpush.msra.mxu0 %v69
    %1950 = vmatmul.f32.gmra.mxu0 %v1932
    %v1951 = vpop.f32.mrf.mxu0
    %v1952 = vadd.f32 0.0, %v1951
    %1953 = vdwg.mxu0
    %1955 = vrot.lane.b32.xlu0 %v1845, 32
    %v1956 = vpop.permute.xlu0 %1955
    %v1957 = vsel %vm165, %v1956, 0
    %1959 = vmatpush.msra.mxu0 0.0
    %1960 = vmatpush.msra.mxu0 0.0
    %1961 = vmatpush.msra.mxu0 0.0
    %1962 = vmatpush.msra.mxu0 0.0
    %1963 = vmatpush.msra.mxu0 0.0
    %1964 = vmatpush.msra.mxu0 0.0
    %1965 = vmatpush.msra.mxu0 0.0
    %1966 = vmatpush.msra.mxu0 0.0
    %1967 = vmatpush.msra.mxu0 0.0
    %1968 = vmatpush.msra.mxu0 0.0
    %1969 = vmatpush.msra.mxu0 0.0
    %1970 = vmatpush.msra.mxu0 0.0
    %1971 = vmatpush.msra.mxu0 %v81
    %1972 = vmatpush.msra.mxu0 %v80
    %1973 = vmatpush.msra.mxu0 %v79
    %1974 = vmatpush.msra.mxu0 %v78
    %1975 = vmatmul.f32.gmra.mxu0 %v1957
    %v1976 = vpop.f32.mrf.mxu0
    %v1977 = vadd.f32 %v1952, %v1976
    %1978 = vdwg.mxu0
    %v1979 = vadd.f32 %v1977, %v85
    %v1980 = vxor.u32 %v1979, 2147483648
    %v1981 = vmul.f32 %v1980, 1.442695
    %v1982 = vpow.pop %v1981
    %v1983 = vadd.f32 %v1982, 1.0
    %v1984 = vrcp.pop %v1983
    %v1985 = vmul.f32 %v1983, %v1984
    %v1986 = vsub.f32 1.0, %v1985
    %v1987 = vmul.f32 %v1984, %v1986
    %v1988 = vadd.f32 %v1984, %v1987
    %vm1989 = vweird.f32 %v1983
    %vm1990 = vweird.f32 %v1984
    %vm1991 = vmor %vm1989, %vm1990
    %v1992 = vsel %vm1991, %v1984, %v1988
    %v1993 = vand.u32 2147483647, %v1983
    %vm1994 = vcmp.eq.f32.partialorder %v1993, 8.507059e+37
    %v1995 = vand.u32 %v1983, 2147483648
    %v1996 = vor.u32 1.1754944e-38, %v1995
    %v1997 = vsel %vm1994, %v1996, %v1992
    %v1998 = vmul.f32 1.0, %v1997
    %v1999 = vtanh.pop %v1979
    %v2000 = vmul.f32 %v1998, %v1919
    %2002 = vrot.lane.b32.xlu0 %v1999, 64
    %v2003 = vpop.permute.xlu0 %2002
    %v2005 = vmul.f32 %v1998, %v2003
    %2007 = vrot.lane.b32.xlu0 %v2005, 32
    %v2008 = vpop.permute.xlu0 %2007
    %v2010 = vadd.f32 %v2000, %v2008
    %v2011 = vtanh.pop %v2010
    %2013 = vrot.lane.b32.xlu0 %v2011, 64
    %v2014 = vpop.permute.xlu0 %2013
    %v2016 = vmul.f32 %v1998, %v2014
    %2018 = vrot.lane.b32.xlu0 %v2016, 32
    %v2019 = vpop.permute.xlu0 %2018
    %s2021 = scalar_lea.vmem [#allocation2], 14
    %2022 = vst.msk [vmem:[%s2021] sm:$0x3] %vm596, %v2019
    %v2023 = vld [vmem:[%s5] sm:$0x1]
    %s2024 = sld [smem:[#allocation3]]
    %v2025 = vld [vmem:[#allocation2] sm:$0x3]
    %v2026 = vld [vmem:[#allocation2 + $0x2] sm:$0x3]
    %v2027 = vld [vmem:[#allocation2 + $0x4] sm:$0x3]
    %v2028 = vld [vmem:[#allocation2 + $0x6] sm:$0x3]
    %v2029 = vld [vmem:[#allocation2 + $0x8] sm:$0x3]
    %v2030 = vld [vmem:[#allocation2 + $0xa] sm:$0x3]
    %v2031 = vld [vmem:[#allocation2 + $0xc] sm:$0x3]
    %v2032 = vld [vmem:[#allocation2 + $0xe] sm:$0x3]
    %v2034 = vperm.slane %v2023, 0
    %v2036 = vmul.f32 %v2025, %v2034
    %v2037 = vmul.f32 %v2026, %v2034
    %v2038 = vmul.f32 %v2027, %v2034
    %v2039 = vmul.f32 %v2028, %v2034
    %v2040 = vmul.f32 %v2029, %v2034
    %v2041 = vmul.f32 %v2030, %v2034
    %v2042 = vmul.f32 %v2031, %v2034
    %v2043 = vmul.f32 %v2032, %v2034
    %v2044 = vsel %vm596, %v2036, 0.0
    %2045 = vadd.xlane.f32.xlu0 %v2044
    %v2046 = vpop.xlane.xlu0 %2045
    %v2047 = vsel %vm596, %v2037, 0.0
    %2048 = vadd.xlane.f32.xlu0 %v2047
    %v2049 = vpop.xlane.xlu0 %2048
    %v2050 = vsel %vm596, %v2038, 0.0
    %2051 = vadd.xlane.f32.xlu0 %v2050
    %v2052 = vpop.xlane.xlu0 %2051
    %v2053 = vsel %vm596, %v2039, 0.0
    %2054 = vadd.xlane.f32.xlu0 %v2053
    %v2055 = vpop.xlane.xlu0 %2054
    %v2056 = vsel %vm596, %v2040, 0.0
    %2057 = vadd.xlane.f32.xlu0 %v2056
    %v2058 = vpop.xlane.xlu0 %2057
    %v2059 = vsel %vm596, %v2041, 0.0
    %2060 = vadd.xlane.f32.xlu0 %v2059
    %v2061 = vpop.xlane.xlu0 %2060
    %v2062 = vsel %vm596, %v2042, 0.0
    %2063 = vadd.xlane.f32.xlu0 %v2062
    %v2064 = vpop.xlane.xlu0 %2063
    %v2065 = vsel %vm596, %v2043, 0.0
    %2066 = vadd.xlane.f32.xlu0 %v2065
    %v2067 = vpop.xlane.xlu0 %2066
    %v2068 = vstv %s2024
    %v2069 = vadd.f32 %v2046, %v2068
    %v2070 = vadd.f32 %v2049, %v2068
    %v2071 = vadd.f32 %v2052, %v2068
    %v2072 = vadd.f32 %v2055, %v2068
    %v2073 = vadd.f32 %v2058, %v2068
    %v2074 = vadd.f32 %v2061, %v2068
    %v2075 = vadd.f32 %v2064, %v2068
    %v2076 = vadd.f32 %v2067, %v2068
    %v2085 = vlaneseq
    %v2086 = vand.u32 %v2085, 127
    %v2087 = vperm.slane %v2069, %v2086
    %v2088 = vperm.slane %v2070, %v2086
    %v2089 = vperm.slane %v2071, %v2086
    %v2090 = vperm.slane %v2072, %v2086
    %v2091 = vperm.slane %v2073, %v2086
    %v2092 = vperm.slane %v2074, %v2086
    %v2093 = vperm.slane %v2075, %v2086
    %v2094 = vperm.slane %v2076, %v2086
    %vm2095 = vcmask 1041409
    %v2096 = vsel %vm2095, %v2088, %v2087
    %vm2097 = vcmask 1042434
    %v2098 = vsel %vm2097, %v2089, %v2096
    %vm2099 = vcmask 1043459
    %v2100 = vsel %vm2099, %v2090, %v2098
    %vm2101 = vcmask 1044484
    %v2102 = vsel %vm2101, %v2091, %v2100
    %vm2103 = vcmask 1045509
    %v2104 = vsel %vm2103, %v2092, %v2102
    %vm2105 = vcmask 1046534
    %v2106 = vsel %vm2105, %v2093, %v2104
    %vm2107 = vcmask 1047559
    %v2108 = vsel %vm2107, %v2094, %v2106
    %vm2110 = vcmask 15360
    %2111 = vst.msk [vmem:[%s7] sm:$0xff] %vm2110, %v2108
    // Predicated region
    $region38: #{tpu_custom_call.1} parent=1 // pred_check
      _
    $region39: #{tpu_custom_call.1} parent=1 // pred_check_branch
      %2113 = sbr.rel (0) target = $region41
    $region40: #{tpu_custom_call.1} parent=1 // pred_region
      _
    $region41: #{tpu_custom_call.1} parent=1 // pred_fallthru
      _
    // Predicated region
    $region42: #{tpu_custom_call.1} parent=1 // pred_check
      _
    $region43: #{tpu_custom_call.1} parent=1 // pred_check_branch
      %2115 = sbr.rel (0) target = $region45
    $region44: #{tpu_custom_call.1} parent=1 // pred_region
      _
    $region45: #{tpu_custom_call.1} parent=1 // pred_fallthru
      _
    %2116 = vsyncpa [#allocation5], 1
    %2117 = vsyncpa [#allocation7], 1

</llo_original>
